<compile_context>
chip_gen: v7x
topology: tpu7x:2x2x1
jax: 0.10.0
libtpu: 0.0.40
codegen_flags: <defaults>
</compile_context>

<pallas_src>
import functools
import math

import jax
import jax.numpy as jnp
from jax import lax
from jax.experimental import pallas as pl
from jax.experimental.pallas import tpu as pltpu


# ----------------------------------------------------------------------------
# Fused kernel: grid = (batch, q_tiles).
# ----------------------------------------------------------------------------
def _modified_mha_kernel(x_full_ref, x_tile_ref, wq_ref, wkv_ref, bq_ref, bkv_ref,
                         o_ref, m_ref, *, num_heads, head_dim, embed_dim,
                         compute_dtype):
    """Refs (leading batch dim squeezed by pl.Squeezed()):
         x_full_ref : (S,  Din)   full sequence (only consumed on the first q tile)
         x_tile_ref : (tq, Din)   current q-row tile
         wq_ref     : (Din, E)    (scale 1/sqrt(hd) folded in)      bq_ref : (1, E)
         wkv_ref    : (Din, 2E)   [W_k | W_v] head-major            bkv_ref: (1, 2E)
         o_ref      : (tq, E)     final lane-dense output tile
         m_ref      : (E, hd)     VMEM scratch, rows [h*hd:(h+1)*hd] hold K_h^T V_h
    """
    E = embed_dim
    hd = head_dim
    cd = compute_dtype
    qt = pl.program_id(1)

    # ---- Once per batch (first q tile): K/V projection + per-head M = K^T V ----
    @pl.when(qt == 0)
    def _():
        xf = x_full_ref[...]
        if xf.dtype != cd:
            xf = xf.astype(cd)                       # in-kernel cast (overlaps DMA)
        # One wide MXU pass for K and V together, f32 accumulation.
        kv = jnp.dot(xf, wkv_ref[...], preferred_element_type=jnp.float32)
        kv = kv + bkv_ref[...]
        if kv.dtype != cd:
            kv = kv.astype(cd)                       # cast once, outside head loop
        for h in range(num_heads):                   # num_heads is small -> unroll
            c0 = h * hd
            k_h = kv[:, c0:c0 + hd]                  # (S, hd)
            v_h = kv[:, E + c0:E + c0 + hd]          # (S, hd)
            # M_h = K_h^T @ V_h : contract the sequence axis (axis 0 of both).
            m_h = lax.dot_general(k_h, v_h,
                                  dimension_numbers=(((0,), (0,)), ((), ())),
                                  preferred_element_type=jnp.float32)   # (hd, hd)
            m_ref[c0:c0 + hd, :] = m_h.astype(m_ref.dtype)

    # ---- Every q tile: project q for this tile, then per-head q_h @ M_h ----
    xt = x_tile_ref[...]
    if xt.dtype != cd:
        xt = xt.astype(cd)
    q_t = jnp.dot(xt, wq_ref[...], preferred_element_type=jnp.float32)
    q_t = q_t + bq_ref[...]
    if q_t.dtype != cd:
        q_t = q_t.astype(cd)                         # cast once, outside head loop
    for h in range(num_heads):
        c0 = h * hd
        res = jnp.dot(q_t[:, c0:c0 + hd], m_ref[c0:c0 + hd, :],
                      preferred_element_type=jnp.float32)               # (tq, hd)
        o_ref[:, c0:c0 + hd] = res.astype(o_ref.dtype)


def modified_mha_forward(x, w_q, w_kv, b_q, b_kv, num_heads, *,
                         q_block=256, out_dtype=jnp.float32,
                         vmem_limit_bytes=None):
    """x: (B, S, Din); w_q: (Din, E); w_kv: (Din, 2E); biases f32 -> (B, S, E)."""
    B, S, Din = x.shape
    E = w_q.shape[1]
    hd = E // num_heads
    compute_dtype = jnp.dtype(w_q.dtype)

    # q-row tile: multiple of 8 (sublane) unless it covers the whole sequence.
    tq = min(int(q_block), S)
    if tq < S:
        tq = max(8, (tq // 8) * 8)
    num_qt = pl.cdiv(S, tq)

    kernel = functools.partial(_modified_mha_kernel, num_heads=num_heads,
                               head_dim=hd, embed_dim=E,
                               compute_dtype=compute_dtype)

    if vmem_limit_bytes is None:
        xb = jnp.dtype(x.dtype).itemsize
        wb = compute_dtype.itemsize
        ob = jnp.dtype(out_dtype).itemsize
        blocks = (S * Din * xb + tq * Din * xb + Din * 3 * E * wb
                  + 3 * E * 4 + tq * E * ob)                 # double-buffered blocks
        temps = (S * 2 * E + tq * E) * (4 + wb)              # kv / q_t temporaries
        est = 2 * blocks + temps + E * hd * wb
        # Headroom, capped at 64 MiB so the same setting is legal on v7x.
        vmem_limit_bytes = int(min(64 * 1024 * 1024, max(8 * 1024 * 1024, 2 * est)))

    return pl.pallas_call(
        kernel,
        out_shape=jax.ShapeDtypeStruct((B, S, E), out_dtype),
        grid=(B, num_qt),
        in_specs=[
            # Full sequence (re-fetched only when the batch index changes).
            pl.BlockSpec((pl.Squeezed(), S, Din), lambda b, qt: (b, 0, 0)),
            # Current q-row tile.
            pl.BlockSpec((pl.Squeezed(), tq, Din), lambda b, qt: (b, qt, 0)),
            pl.BlockSpec((Din, E), lambda b, qt: (0, 0)),
            pl.BlockSpec((Din, 2 * E), lambda b, qt: (0, 0)),
            pl.BlockSpec((1, E), lambda b, qt: (0, 0)),
            pl.BlockSpec((1, 2 * E), lambda b, qt: (0, 0)),
        ],
        out_specs=pl.BlockSpec((pl.Squeezed(), tq, E), lambda b, qt: (b, qt, 0)),
        scratch_shapes=[pltpu.VMEM((E, hd), compute_dtype)],   # per-head K^T V
        compiler_params=pltpu.CompilerParams(
            dimension_semantics=("parallel", "arbitrary"),
            vmem_limit_bytes=vmem_limit_bytes),
    )(x, x, w_q, w_kv, b_q, b_kv)


# ----------------------------------------------------------------------------
# Module wrapper (matches the PyTorch module's parameterization).
# ----------------------------------------------------------------------------
class BiasedModifiedMultiheadAttentionPallas:
    def __init__(self, input_dim, embed_dim, num_heads, key,
                 compute_dtype=jnp.bfloat16, q_block=256):
        assert embed_dim % num_heads == 0
        self.input_dim = input_dim
        self.embed_dim = embed_dim
        self.num_heads = num_heads
        self.head_dim = embed_dim // num_heads
        self.q_block = q_block

        # xavier_uniform_ on torch weight (3E, Din): fan_in=Din, fan_out=3E.
        bound = math.sqrt(6.0 / (input_dim + 3 * embed_dim))
        w_torch = jax.random.uniform(
            key, (3 * embed_dim, input_dim), jnp.float32, -bound, bound)

        # Original layout (kept for the pure-JAX reference): x @ w_full + b_full.
        self.w_full = jnp.transpose(w_torch)                    # (Din, 3E)
        self.b_full = jnp.zeros((3 * embed_dim,), jnp.float32)

        # One-time column reorder: reshape(B,S,H,3hd).chunk(3) means column c of
        # (Din, 3E) belongs to head c // (3hd); within a head first hd cols -> q,
        # next hd -> k, last hd -> v.  Fold 1/sqrt(hd) into W_q / b_q.
        hd = self.head_dim
        scale = 1.0 / math.sqrt(hd)
        w_r = self.w_full.reshape(input_dim, num_heads, 3, hd)
        wq = w_r[:, :, 0, :].reshape(input_dim, embed_dim) * scale
        wk = w_r[:, :, 1, :].reshape(input_dim, embed_dim)
        wv = w_r[:, :, 2, :].reshape(input_dim, embed_dim)
        b_r = self.b_full.reshape(num_heads, 3, hd)
        bq = b_r[:, 0, :].reshape(1, embed_dim) * scale
        bk = b_r[:, 1, :].reshape(1, embed_dim)
        bv = b_r[:, 2, :].reshape(1, embed_dim)

        cd = jnp.dtype(compute_dtype)
        # Weights cast to the MXU compute dtype ONCE here (not per call).
        self.w_q = wq.astype(cd)                                     # (Din, E)
        self.w_kv = jnp.concatenate([wk, wv], axis=1).astype(cd)     # (Din, 2E)
        # Biases stay f32 (VPU adds on the f32 accumulators).
        self.b_q = bq
        self.b_kv = jnp.concatenate([bk, bv], axis=1)

    def __call__(self, x, mask=None, return_attention=False):
        # TODO(synk): mask / return_attention paths of the PyTorch forward are not
        # implemented (attention logits are never materialized).
        assert mask is None and not return_attention
        return modified_mha_forward(x, self.w_q, self.w_kv, self.b_q, self.b_kv,
                                    self.num_heads, q_block=self.q_block)


# ----------------------------------------------------------------------------
# Pure-JAX reference (mirrors the PyTorch module exactly, un-reordered weight).
# ----------------------------------------------------------------------------
def reference_forward(x, w_full, b_full, num_heads):
    B, S, Din = x.shape
    E = w_full.shape[1] // 3
    hd = E // num_heads
    qkv = jnp.dot(x.reshape(B * S, Din), w_full,
                  precision=lax.Precision.HIGHEST) + b_full[None, :]
    qkv = qkv.reshape(B, S, num_heads, 3 * hd).transpose(0, 2, 1, 3)
    q, k, v = jnp.split(qkv, 3, axis=-1)
    attn = jnp.einsum("bhqd,bhkd->bhqk", q, k,
                      precision=lax.Precision.HIGHEST) / math.sqrt(hd)  # no softmax
    vals = jnp.einsum("bhqk,bhkd->bhqd", attn, v,
                      precision=lax.Precision.HIGHEST)
    return vals.transpose(0, 2, 1, 3).reshape(B, S, E)


if __name__ == "__main__":
    key = jax.random.PRNGKey(0)
    k_w, k_x, k_w2, k_x2 = jax.random.split(key, 4)

    # --- Test 1: small shapes, single q tile -------------------------------
    batch, seq, input_dim, embed_dim, num_heads = 2, 8, 32, 32, 4
    x = jax.random.normal(k_x, (batch, seq, input_dim), jnp.float32)

    # f32 compute path: should match the reference tightly (re-association only).
    mod_f32 = BiasedModifiedMultiheadAttentionPallas(
        input_dim, embed_dim, num_heads, k_w, compute_dtype=jnp.float32)
    out = jax.block_until_ready(mod_f32(x))
    ref = reference_forward(x, mod_f32.w_full, mod_f32.b_full, num_heads)
    assert out.shape == (batch, seq, embed_dim)
    assert jnp.allclose(out, ref, atol=2e-3, rtol=2e-3), "f32 mismatch vs reference"

    # bf16 MXU-input path (default; f32 accumulation) — loose tolerance.
    mod_bf16 = BiasedModifiedMultiheadAttentionPallas(
        input_dim, embed_dim, num_heads, k_w, compute_dtype=jnp.bfloat16)
    out_bf16 = jax.block_until_ready(mod_bf16(x))
    assert out_bf16.shape == (batch, seq, embed_dim)
    assert jnp.allclose(out_bf16, ref, atol=1.5e-1, rtol=1.5e-1), \
        "bf16 mismatch vs reference"

    # --- Test 2: B=1, multiple q tiles (exercises the (batch, q-tile) grid) --
    b2, s2, din2, e2, h2 = 1, 64, 48, 64, 8
    x2 = jax.random.normal(k_x2, (b2, s2, din2), jnp.float32)
    mod2 = BiasedModifiedMultiheadAttentionPallas(
        din2, e2, h2, k_w2, compute_dtype=jnp.float32, q_block=16)
    out2 = jax.block_until_ready(mod2(x2))
    ref2 = reference_forward(x2, mod2.w_full, mod2.b_full, h2)
    assert out2.shape == (b2, s2, e2)
    assert jnp.allclose(out2, ref2, atol=2e-3, rtol=2e-3), "tiled f32 mismatch"

    print("KERNEL_OK")
</pallas_src>

<mosaic_0001>
module attributes {stable_mosaic.version = 11 : i64} {
  func.func @_modified_mha_kernel(%arg0: i32, %arg1: i32, %arg2: memref<1x8x32xf32, #tpu.memory_space<vmem>>, %arg3: memref<1x8x32xf32, #tpu.memory_space<vmem>>, %arg4: memref<32x32xf32, #tpu.memory_space<vmem>>, %arg5: memref<32x64xf32, #tpu.memory_space<vmem>>, %arg6: memref<1x32xf32, #tpu.memory_space<vmem>>, %arg7: memref<1x64xf32, #tpu.memory_space<vmem>>, %arg8: memref<1x8x32xf32, #tpu.memory_space<vmem>>, %arg9: memref<32x8xf32, #tpu.memory_space<vmem>>) attributes {dimension_semantics = [#tpu.dimension_semantics<parallel>, #tpu.dimension_semantics<arbitrary>], iteration_bounds = array<i64: 2, 1>, scalar_prefetch = 0 : i64, scratch_operands = 1 : i64, tpu.core_type = #tpu.core_type<tc>, window_params = [{transform_indices = @transform_0, window_bounds = array<i64: 1, 8, 32>}, {transform_indices = @transform_1, window_bounds = array<i64: 1, 8, 32>}, {pipeline_mode = #tpu.pipeline_mode<synchronous>, transform_indices = @transform_2, window_bounds = array<i64: 32, 32>}, {pipeline_mode = #tpu.pipeline_mode<synchronous>, transform_indices = @transform_3, window_bounds = array<i64: 32, 64>}, {pipeline_mode = #tpu.pipeline_mode<synchronous>, transform_indices = @transform_4, window_bounds = array<i64: 1, 32>}, {pipeline_mode = #tpu.pipeline_mode<synchronous>, transform_indices = @transform_5, window_bounds = array<i64: 1, 64>}, {transform_indices = @transform_6, window_bounds = array<i64: 1, 8, 32>}]} {
    %c0_i32 = arith.constant 0 : i32
    %0 = arith.cmpi eq, %arg1, %c0_i32 : i32
    %1 = arith.extui %0 : i1 to i32
    %c0_i32_0 = arith.constant 0 : i32
    %2 = arith.cmpi ne, %1, %c0_i32_0 : i32
    scf.if %2 {
      %c0_28 = arith.constant 0 : index
      %c0_29 = arith.constant 0 : index
      %c0_30 = arith.constant 0 : index
      %34 = vector.load %arg2[%c0_28, %c0_29, %c0_30] : memref<1x8x32xf32, #tpu.memory_space<vmem>>, vector<1x8x32xf32>
      %35 = vector.shape_cast %34 : vector<1x8x32xf32> to vector<8x32xf32>
      %c0_31 = arith.constant 0 : index
      %c0_32 = arith.constant 0 : index
      %36 = vector.load %arg5[%c0_31, %c0_32] : memref<32x64xf32, #tpu.memory_space<vmem>>, vector<32x64xf32>
      %cst_33 = arith.constant dense<0.000000e+00> : vector<8x64xf32>
      %37 = tpu.matmul %35, %36, %cst_33 {dimension_numbers = #tpu.dot_dimension_numbers<[1], [0], [0], [1], [0, 0, 1, 1], [], []>} : vector<8x32xf32>, vector<32x64xf32>, vector<8x64xf32> -> vector<8x64xf32>
      %c0_34 = arith.constant 0 : index
      %c0_35 = arith.constant 0 : index
      %38 = vector.load %arg7[%c0_34, %c0_35] : memref<1x64xf32, #tpu.memory_space<vmem>>, vector<1x64xf32>
      %39 = vector.broadcast %38 : vector<1x64xf32> to vector<8x64xf32>
      %40 = arith.addf %37, %39 : vector<8x64xf32>
      %41 = vector.extract_strided_slice %40 {offsets = [0, 0], sizes = [8, 8], strides = [1, 1]} : vector<8x64xf32> to vector<8x8xf32>
      %42 = vector.extract_strided_slice %40 {offsets = [0, 32], sizes = [8, 8], strides = [1, 1]} : vector<8x64xf32> to vector<8x8xf32>
      %cst_36 = arith.constant dense<0.000000e+00> : vector<8x8xf32>
      %43 = tpu.matmul %41, %42, %cst_36 {dimension_numbers = #tpu.dot_dimension_numbers<[0], [0], [1], [1], [0, 1, 1, 1], [], []>} : vector<8x8xf32>, vector<8x8xf32>, vector<8x8xf32> -> vector<8x8xf32>
      %c0_37 = arith.constant 0 : index
      %c0_38 = arith.constant 0 : index
      %44 = vector.load %arg9[%c0_37, %c0_38] : memref<32x8xf32, #tpu.memory_space<vmem>>, vector<8x8xf32>
      tpu.vector_store %arg9[%c0_37, %c0_38], %43 {strides = array<i32>} : memref<32x8xf32, #tpu.memory_space<vmem>>, vector<8x8xf32>,
      %45 = vector.extract_strided_slice %40 {offsets = [0, 8], sizes = [8, 8], strides = [1, 1]} : vector<8x64xf32> to vector<8x8xf32>
      %46 = vector.extract_strided_slice %40 {offsets = [0, 40], sizes = [8, 8], strides = [1, 1]} : vector<8x64xf32> to vector<8x8xf32>
      %cst_39 = arith.constant dense<0.000000e+00> : vector<8x8xf32>
      %47 = tpu.matmul %45, %46, %cst_39 {dimension_numbers = #tpu.dot_dimension_numbers<[0], [0], [1], [1], [0, 1, 1, 1], [], []>} : vector<8x8xf32>, vector<8x8xf32>, vector<8x8xf32> -> vector<8x8xf32>
      %c8_40 = arith.constant 8 : index
      %c0_41 = arith.constant 0 : index
      %48 = vector.load %arg9[%c8_40, %c0_41] : memref<32x8xf32, #tpu.memory_space<vmem>>, vector<8x8xf32>
      tpu.vector_store %arg9[%c8_40, %c0_41], %47 {strides = array<i32>} : memref<32x8xf32, #tpu.memory_space<vmem>>, vector<8x8xf32>,
      %49 = vector.extract_strided_slice %40 {offsets = [0, 16], sizes = [8, 8], strides = [1, 1]} : vector<8x64xf32> to vector<8x8xf32>
      %50 = vector.extract_strided_slice %40 {offsets = [0, 48], sizes = [8, 8], strides = [1, 1]} : vector<8x64xf32> to vector<8x8xf32>
      %cst_42 = arith.constant dense<0.000000e+00> : vector<8x8xf32>
      %51 = tpu.matmul %49, %50, %cst_42 {dimension_numbers = #tpu.dot_dimension_numbers<[0], [0], [1], [1], [0, 1, 1, 1], [], []>} : vector<8x8xf32>, vector<8x8xf32>, vector<8x8xf32> -> vector<8x8xf32>
      %c16_43 = arith.constant 16 : index
      %c0_44 = arith.constant 0 : index
      %52 = vector.load %arg9[%c16_43, %c0_44] : memref<32x8xf32, #tpu.memory_space<vmem>>, vector<8x8xf32>
      tpu.vector_store %arg9[%c16_43, %c0_44], %51 {strides = array<i32>} : memref<32x8xf32, #tpu.memory_space<vmem>>, vector<8x8xf32>,
      %53 = vector.extract_strided_slice %40 {offsets = [0, 24], sizes = [8, 8], strides = [1, 1]} : vector<8x64xf32> to vector<8x8xf32>
      %54 = vector.extract_strided_slice %40 {offsets = [0, 56], sizes = [8, 8], strides = [1, 1]} : vector<8x64xf32> to vector<8x8xf32>
      %cst_45 = arith.constant dense<0.000000e+00> : vector<8x8xf32>
      %55 = tpu.matmul %53, %54, %cst_45 {dimension_numbers = #tpu.dot_dimension_numbers<[0], [0], [1], [1], [0, 1, 1, 1], [], []>} : vector<8x8xf32>, vector<8x8xf32>, vector<8x8xf32> -> vector<8x8xf32>
      %c24_46 = arith.constant 24 : index
      %c0_47 = arith.constant 0 : index
      %56 = vector.load %arg9[%c24_46, %c0_47] : memref<32x8xf32, #tpu.memory_space<vmem>>, vector<8x8xf32>
      tpu.vector_store %arg9[%c24_46, %c0_47], %55 {strides = array<i32>} : memref<32x8xf32, #tpu.memory_space<vmem>>, vector<8x8xf32>,
    } else {
    }
    %c0 = arith.constant 0 : index
    %c0_1 = arith.constant 0 : index
    %c0_2 = arith.constant 0 : index
    %3 = vector.load %arg3[%c0, %c0_1, %c0_2] : memref<1x8x32xf32, #tpu.memory_space<vmem>>, vector<1x8x32xf32>
    %4 = vector.shape_cast %3 : vector<1x8x32xf32> to vector<8x32xf32>
    %c0_3 = arith.constant 0 : index
    %c0_4 = arith.constant 0 : index
    %5 = vector.load %arg4[%c0_3, %c0_4] : memref<32x32xf32, #tpu.memory_space<vmem>>, vector<32x32xf32>
    %cst = arith.constant dense<0.000000e+00> : vector<8x32xf32>
    %6 = tpu.matmul %4, %5, %cst {dimension_numbers = #tpu.dot_dimension_numbers<[1], [0], [0], [1], [0, 0, 1, 1], [], []>} : vector<8x32xf32>, vector<32x32xf32>, vector<8x32xf32> -> vector<8x32xf32>
    %c0_5 = arith.constant 0 : index
    %c0_6 = arith.constant 0 : index
    %7 = vector.load %arg6[%c0_5, %c0_6] : memref<1x32xf32, #tpu.memory_space<vmem>>, vector<1x32xf32>
    %8 = vector.broadcast %7 : vector<1x32xf32> to vector<8x32xf32>
    %9 = arith.addf %6, %8 : vector<8x32xf32>
    %10 = vector.extract_strided_slice %9 {offsets = [0, 0], sizes = [8, 8], strides = [1, 1]} : vector<8x32xf32> to vector<8x8xf32>
    %c0_7 = arith.constant 0 : index
    %c0_8 = arith.constant 0 : index
    %11 = vector.load %arg9[%c0_7, %c0_8] : memref<32x8xf32, #tpu.memory_space<vmem>>, vector<8x8xf32>
    %cst_9 = arith.constant dense<0.000000e+00> : vector<8x8xf32>
    %12 = tpu.matmul %10, %11, %cst_9 {dimension_numbers = #tpu.dot_dimension_numbers<[1], [0], [0], [1], [0, 0, 1, 1], [], []>} : vector<8x8xf32>, vector<8x8xf32>, vector<8x8xf32> -> vector<8x8xf32>
    %c0_10 = arith.constant 0 : index
    %c0_11 = arith.constant 0 : index
    %c0_12 = arith.constant 0 : index
    %13 = vector.load %arg8[%c0_10, %c0_11, %c0_12] : memref<1x8x32xf32, #tpu.memory_space<vmem>>, vector<1x8x8xf32>
    %14 = vector.shape_cast %13 : vector<1x8x8xf32> to vector<8x8xf32>
    %15 = vector.shape_cast %12 : vector<8x8xf32> to vector<1x8x8xf32>
    tpu.vector_store %arg8[%c0_10, %c0_11, %c0_12], %15 {strides = array<i32>} : memref<1x8x32xf32, #tpu.memory_space<vmem>>, vector<1x8x8xf32>,
    %16 = vector.extract_strided_slice %9 {offsets = [0, 8], sizes = [8, 8], strides = [1, 1]} : vector<8x32xf32> to vector<8x8xf32>
    %c8 = arith.constant 8 : index
    %c0_13 = arith.constant 0 : index
    %17 = vector.load %arg9[%c8, %c0_13] : memref<32x8xf32, #tpu.memory_space<vmem>>, vector<8x8xf32>
    %cst_14 = arith.constant dense<0.000000e+00> : vector<8x8xf32>
    %18 = tpu.matmul %16, %17, %cst_14 {dimension_numbers = #tpu.dot_dimension_numbers<[1], [0], [0], [1], [0, 0, 1, 1], [], []>} : vector<8x8xf32>, vector<8x8xf32>, vector<8x8xf32> -> vector<8x8xf32>
    %c0_15 = arith.constant 0 : index
    %c0_16 = arith.constant 0 : index
    %c8_17 = arith.constant 8 : index
    %19 = vector.load %arg8[%c0_15, %c0_16, %c8_17] : memref<1x8x32xf32, #tpu.memory_space<vmem>>, vector<1x8x8xf32>
    %20 = vector.shape_cast %19 : vector<1x8x8xf32> to vector<8x8xf32>
    %21 = vector.shape_cast %18 : vector<8x8xf32> to vector<1x8x8xf32>
    tpu.vector_store %arg8[%c0_15, %c0_16, %c8_17], %21 {strides = array<i32>} : memref<1x8x32xf32, #tpu.memory_space<vmem>>, vector<1x8x8xf32>,
    %22 = vector.extract_strided_slice %9 {offsets = [0, 16], sizes = [8, 8], strides = [1, 1]} : vector<8x32xf32> to vector<8x8xf32>
    %c16 = arith.constant 16 : index
    %c0_18 = arith.constant 0 : index
    %23 = vector.load %arg9[%c16, %c0_18] : memref<32x8xf32, #tpu.memory_space<vmem>>, vector<8x8xf32>
    %cst_19 = arith.constant dense<0.000000e+00> : vector<8x8xf32>
    %24 = tpu.matmul %22, %23, %cst_19 {dimension_numbers = #tpu.dot_dimension_numbers<[1], [0], [0], [1], [0, 0, 1, 1], [], []>} : vector<8x8xf32>, vector<8x8xf32>, vector<8x8xf32> -> vector<8x8xf32>
    %c0_20 = arith.constant 0 : index
    %c0_21 = arith.constant 0 : index
    %c16_22 = arith.constant 16 : index
    %25 = vector.load %arg8[%c0_20, %c0_21, %c16_22] : memref<1x8x32xf32, #tpu.memory_space<vmem>>, vector<1x8x8xf32>
    %26 = vector.shape_cast %25 : vector<1x8x8xf32> to vector<8x8xf32>
    %27 = vector.shape_cast %24 : vector<8x8xf32> to vector<1x8x8xf32>
    tpu.vector_store %arg8[%c0_20, %c0_21, %c16_22], %27 {strides = array<i32>} : memref<1x8x32xf32, #tpu.memory_space<vmem>>, vector<1x8x8xf32>,
    %28 = vector.extract_strided_slice %9 {offsets = [0, 24], sizes = [8, 8], strides = [1, 1]} : vector<8x32xf32> to vector<8x8xf32>
    %c24 = arith.constant 24 : index
    %c0_23 = arith.constant 0 : index
    %29 = vector.load %arg9[%c24, %c0_23] : memref<32x8xf32, #tpu.memory_space<vmem>>, vector<8x8xf32>
    %cst_24 = arith.constant dense<0.000000e+00> : vector<8x8xf32>
    %30 = tpu.matmul %28, %29, %cst_24 {dimension_numbers = #tpu.dot_dimension_numbers<[1], [0], [0], [1], [0, 0, 1, 1], [], []>} : vector<8x8xf32>, vector<8x8xf32>, vector<8x8xf32> -> vector<8x8xf32>
    %c0_25 = arith.constant 0 : index
    %c0_26 = arith.constant 0 : index
    %c24_27 = arith.constant 24 : index
    %31 = vector.load %arg8[%c0_25, %c0_26, %c24_27] : memref<1x8x32xf32, #tpu.memory_space<vmem>>, vector<1x8x8xf32>
    %32 = vector.shape_cast %31 : vector<1x8x8xf32> to vector<8x8xf32>
    %33 = vector.shape_cast %30 : vector<8x8xf32> to vector<1x8x8xf32>
    tpu.vector_store %arg8[%c0_25, %c0_26, %c24_27], %33 {strides = array<i32>} : memref<1x8x32xf32, #tpu.memory_space<vmem>>, vector<1x8x8xf32>,
    return
  }
  func.func @transform_0(%arg0: i32, %arg1: i32) -> (i32, i32, i32) {
    %c0_i32 = arith.constant 0 : i32
    %c0_i32_0 = arith.constant 0 : i32
    %c0_i32_1 = arith.constant 0 : i32
    return %arg0, %c0_i32, %c0_i32_0 : i32, i32, i32
  }
  func.func @transform_1(%arg0: i32, %arg1: i32) -> (i32, i32, i32) {
    %c0_i32 = arith.constant 0 : i32
    %c0_i32_0 = arith.constant 0 : i32
    return %arg0, %arg1, %c0_i32 : i32, i32, i32
  }
  func.func @transform_2(%arg0: i32, %arg1: i32) -> (i32, i32) {
    %c0_i32 = arith.constant 0 : i32
    %c0_i32_0 = arith.constant 0 : i32
    %c0_i32_1 = arith.constant 0 : i32
    return %c0_i32, %c0_i32_0 : i32, i32
  }
  func.func @transform_3(%arg0: i32, %arg1: i32) -> (i32, i32) {
    %c0_i32 = arith.constant 0 : i32
    %c0_i32_0 = arith.constant 0 : i32
    %c0_i32_1 = arith.constant 0 : i32
    return %c0_i32, %c0_i32_0 : i32, i32
  }
  func.func @transform_4(%arg0: i32, %arg1: i32) -> (i32, i32) {
    %c0_i32 = arith.constant 0 : i32
    %c0_i32_0 = arith.constant 0 : i32
    %c0_i32_1 = arith.constant 0 : i32
    return %c0_i32, %c0_i32_0 : i32, i32
  }
  func.func @transform_5(%arg0: i32, %arg1: i32) -> (i32, i32) {
    %c0_i32 = arith.constant 0 : i32
    %c0_i32_0 = arith.constant 0 : i32
    %c0_i32_1 = arith.constant 0 : i32
    return %c0_i32, %c0_i32_0 : i32, i32
  }
  func.func @transform_6(%arg0: i32, %arg1: i32) -> (i32, i32, i32) {
    %c0_i32 = arith.constant 0 : i32
    %c0_i32_0 = arith.constant 0 : i32
    return %arg0, %arg1, %c0_i32 : i32, i32, i32
  }
}

</mosaic_0001>

<llo_original>
// kernel: tpu_custom_call.1
$region0: #{tpu_custom_call.1}
  #allocation0 [shape = 'u32[]', space=smem, size = 0x4, offset = 0x4, fixed_abs, tag = 'smem constant byte address 0x4 - core index']
  #allocation1 [shape = 'u32[144,128]{1,0:T(1,128)}', space=vmem, size = 0x12000, scoped, tag = 'internal scratch']
  #allocation2 [shape = 'f32[32,8]{1,0:T(8,128)}', space=vmem, size = 0x4000, scoped, tag = 'scratch operand']
  %s0 = inlined_call_operand.hbm [shape: f32[2,8,32], index: 0, kind: input, shape index: {}]
  %s1 = inlined_call_operand.hbm [shape: f32[2,8,32], index: 1, kind: input, shape index: {}]
  %s2 = inlined_call_operand.hbm [shape: f32[32,32], index: 2, kind: input, shape index: {}]
  %s3 = inlined_call_operand.hbm [shape: f32[32,64], index: 3, kind: input, shape index: {}]
  %s4 = inlined_call_operand.vmem [shape: f32[1,32], index: 4, kind: input, shape index: {}]
  %s5 = inlined_call_operand.vmem [shape: f32[1,64], index: 5, kind: input, shape index: {}]
  %s6 = inlined_call_operand.hbm [shape: f32[2,8,32], index: 6, kind: output, shape index: {}]
  %s7 = sld [smem:[#allocation0]]
  $region77: #{tpu_custom_call.1} parent=0
    _
  %s9 = ssub.s32 1, %s7
  %s10 = scalar_select 0, %s9, %s7
  $region1: #{tpu_custom_call.1} parent=0
    #allocation3 [shape = 'u8[8192]{0}', space=vmem, size = 0x2000, scoped, tag = 'input window, operand 0']
    #allocation4 [shape = 's32[2]{0}', space=sflag, size = 0x8, scoped, tag = 'scoped memory for tpu_custom_call.1']
    #allocation5 [shape = 's32[2]{0}', space=sflag, size = 0x8, scoped, tag = 'scoped memory for tpu_custom_call.1']
    #allocation6 [shape = 'u8[8192]{0}', space=vmem, size = 0x2000, scoped, tag = 'input window, operand 1']
    #allocation7 [shape = 's32[2]{0}', space=sflag, size = 0x8, scoped, tag = 'scoped memory for tpu_custom_call.1']
    #allocation8 [shape = 'u8[16384]{0}', space=vmem, size = 0x4000, scoped, tag = 'input window, operand 2, single buffered']
    #allocation9 [shape = 'u8[16384]{0}', space=vmem, size = 0x4000, scoped, tag = 'input window, operand 3, single buffered']
    #allocation10 [shape = 's32[1]{0}', space=sflag, size = 0x4, scoped, tag = 'scoped memory for tpu_custom_call.1']
    #allocation11 [shape = 'u8[8192]{0}', space=vmem, size = 0x2000, scoped, tag = 'output window, operand 0']
    %11 = vsyncpa [#allocation4], 0
    %s12 = scalar_lea.sflag [#allocation4], 1
    %13 = vsyncpa %s12, 0
    %14 = vsyncpa [#allocation7], 0
    %s15 = scalar_lea.sflag [#allocation7], 1
    %16 = vsyncpa %s15, 0
    %17 = vsyncpa [#allocation10], 0
    %18 = vsyncpa [#allocation5], 0
    %s19 = scalar_lea.sflag [#allocation5], 1
    %20 = vsyncpa %s19, 0
    loop: start=0, step=1, limit=4
    $region2: #{tpu_custom_call.1} parent=1 // loop_pre_header
      _
    $region3: #{tpu_custom_call.1} parent=1 // loop_header
      %s22 = sphi 0, %s26
      %p23 = scmp.ge.s32.totalorder %s22, 4
      %s29 = sphi 0, %s41
      %s30 = sphi 0, %s37
      %s31 = sphi 0, %s29
      %s32 = sphi 0, %s30
      %s33 = sphi 0, %s31
      %s34 = sphi 0, %s32
      %s44 = sphi 0, %s46
      %s47 = sphi 0, %s44
      %s48 = sphi 0, %s47
      %s64 = sphi 0, %s48
      %s72 = sphi 0, %s74
      %s75 = sphi 0, %s72
      %s76 = sphi 0, %s75
      %s92 = sphi 0, %s76
      %s96 = sphi 0, %s96
      %s98 = sphi 0, %s96
      %s99 = sphi 0, %s98
      %s113 = sphi 0, %s99
      %s117 = sphi 0, %s117
      %s119 = sphi 0, %s117
      %s120 = sphi 0, %s119
      %s134 = sphi 0, %s120
      %s138 = sphi 0, %s138
      %s140 = sphi 0, %s138
      %s141 = sphi 0, %s140
      %s155 = sphi 0, %s141
      %s159 = sphi 0, %s159
      %s161 = sphi 0, %s159
      %s162 = sphi 0, %s161
      %s176 = sphi 0, %s162
      %s184 = sphi 0, %s186
      %s187 = sphi 0, %s184
      %s188 = sphi 0, %s187
      %s204 = sphi 0, %s188
    $region4: #{tpu_custom_call.1} parent=1 // loop_header_branch
      %25 = sbr.rel (%p23) target = $region8
    $region5: #{tpu_custom_call.1} parent=1 // loop_body
      %s27 = ssub.s32 %s22, 1
      %s28 = ssub.s32 %s22, 2
      %s35 = sadd.s32 1, %s30
      %p36 = scmp.ge.s32.totalorder %s35, 1
      %s37 = scalar_select %p36, 0, %s35
      %s38 = sadd.s32 1, %s29
      %s39 = scalar_select %p36, %s38, %s29
      %p40 = scmp.ge.s32.totalorder %s39, 2
      %s41 = scalar_select %p40, 0, %s39
      %s42 = ssub.s32 %s29, %s41
      %p43 = scmp.eq.s32.totalorder %s42, 0
      %s45 = sadd.s32 %s44, 1
      %s46 = scalar_select %p43, %s44, %s45
      %p49 = pneg %p43
      %p50 = scmp.eq.s32.totalorder %s22, 1
      %p51 = por %p49, %p50
      %p52 = scmp.ne.s32.totalorder %s44, %s47
      %p53 = scmp.eq.s32.totalorder %s22, 0
      %p54 = por %p52, %p53
      %p55 = scmp.ne.s32.totalorder %s44, %s47
      %p56 = scmp.eq.s32.totalorder %s27, 1
      %p57 = por %p55, %p56
      %p58 = scmp.ne.s32.totalorder %s47, %s48
      %p59 = scmp.eq.s32.totalorder %s27, 0
      %p60 = por %p58, %p59
      %p61 = scmp.ne.s32.totalorder %s47, %s48
      %p62 = scmp.eq.s32.totalorder %s28, 1
      %p63 = por %p61, %p62
      %p65 = scmp.ne.s32.totalorder %s48, %s64
      %p66 = scmp.eq.s32.totalorder %s28, 0
      %p67 = por %p65, %p66
      %s68 = ssub.s32 %s29, %s41
      %s69 = ssub.s32 %s30, %s37
      %s70 = sor.u32 %s68, %s69
      %p71 = scmp.eq.s32.totalorder %s70, 0
      %s73 = sadd.s32 %s72, 1
      %s74 = scalar_select %p71, %s72, %s73
      %p77 = pneg %p71
      %p78 = scmp.eq.s32.totalorder %s22, 1
      %p79 = por %p77, %p78
      %p80 = scmp.ne.s32.totalorder %s72, %s75
      %p81 = scmp.eq.s32.totalorder %s22, 0
      %p82 = por %p80, %p81
      %p83 = scmp.ne.s32.totalorder %s72, %s75
      %p84 = scmp.eq.s32.totalorder %s27, 1
      %p85 = por %p83, %p84
      %p86 = scmp.ne.s32.totalorder %s75, %s76
      %p87 = scmp.eq.s32.totalorder %s27, 0
      %p88 = por %p86, %p87
      %p89 = scmp.ne.s32.totalorder %s75, %s76
      %p90 = scmp.eq.s32.totalorder %s28, 1
      %p91 = por %p89, %p90
      %p93 = scmp.ne.s32.totalorder %s76, %s92
      %p94 = scmp.eq.s32.totalorder %s28, 0
      %p95 = por %p93, %p94
      %s97 = sadd.s32 %s96, 1
      %p100 = scmp.eq.s32.totalorder %s22, 1
      %p101 = scmp.ne.s32.totalorder %s96, %s98
      %p102 = scmp.eq.s32.totalorder %s22, 0
      %p103 = por %p101, %p102
      %p104 = scmp.ne.s32.totalorder %s96, %s98
      %p105 = scmp.eq.s32.totalorder %s27, 1
      %p106 = por %p104, %p105
      %p107 = scmp.ne.s32.totalorder %s98, %s99
      %p108 = scmp.eq.s32.totalorder %s27, 0
      %p109 = por %p107, %p108
      %p110 = scmp.ne.s32.totalorder %s98, %s99
      %p111 = scmp.eq.s32.totalorder %s28, 1
      %p112 = por %p110, %p111
      %p114 = scmp.ne.s32.totalorder %s99, %s113
      %p115 = scmp.eq.s32.totalorder %s28, 0
      %p116 = por %p114, %p115
      %s118 = sadd.s32 %s117, 1
      %p121 = scmp.eq.s32.totalorder %s22, 1
      %p122 = scmp.ne.s32.totalorder %s117, %s119
      %p123 = scmp.eq.s32.totalorder %s22, 0
      %p124 = por %p122, %p123
      %p125 = scmp.ne.s32.totalorder %s117, %s119
      %p126 = scmp.eq.s32.totalorder %s27, 1
      %p127 = por %p125, %p126
      %p128 = scmp.ne.s32.totalorder %s119, %s120
      %p129 = scmp.eq.s32.totalorder %s27, 0
      %p130 = por %p128, %p129
      %p131 = scmp.ne.s32.totalorder %s119, %s120
      %p132 = scmp.eq.s32.totalorder %s28, 1
      %p133 = por %p131, %p132
      %p135 = scmp.ne.s32.totalorder %s120, %s134
      %p136 = scmp.eq.s32.totalorder %s28, 0
      %p137 = por %p135, %p136
      %s139 = sadd.s32 %s138, 1
      %p142 = scmp.eq.s32.totalorder %s22, 1
      %p143 = scmp.ne.s32.totalorder %s138, %s140
      %p144 = scmp.eq.s32.totalorder %s22, 0
      %p145 = por %p143, %p144
      %p146 = scmp.ne.s32.totalorder %s138, %s140
      %p147 = scmp.eq.s32.totalorder %s27, 1
      %p148 = por %p146, %p147
      %p149 = scmp.ne.s32.totalorder %s140, %s141
      %p150 = scmp.eq.s32.totalorder %s27, 0
      %p151 = por %p149, %p150
      %p152 = scmp.ne.s32.totalorder %s140, %s141
      %p153 = scmp.eq.s32.totalorder %s28, 1
      %p154 = por %p152, %p153
      %p156 = scmp.ne.s32.totalorder %s141, %s155
      %p157 = scmp.eq.s32.totalorder %s28, 0
      %p158 = por %p156, %p157
      %s160 = sadd.s32 %s159, 1
      %p163 = scmp.eq.s32.totalorder %s22, 1
      %p164 = scmp.ne.s32.totalorder %s159, %s161
      %p165 = scmp.eq.s32.totalorder %s22, 0
      %p166 = por %p164, %p165
      %p167 = scmp.ne.s32.totalorder %s159, %s161
      %p168 = scmp.eq.s32.totalorder %s27, 1
      %p169 = por %p167, %p168
      %p170 = scmp.ne.s32.totalorder %s161, %s162
      %p171 = scmp.eq.s32.totalorder %s27, 0
      %p172 = por %p170, %p171
      %p173 = scmp.ne.s32.totalorder %s161, %s162
      %p174 = scmp.eq.s32.totalorder %s28, 1
      %p175 = por %p173, %p174
      %p177 = scmp.ne.s32.totalorder %s162, %s176
      %p178 = scmp.eq.s32.totalorder %s28, 0
      %p179 = por %p177, %p178
      %s180 = ssub.s32 %s29, %s41
      %s181 = ssub.s32 %s30, %s37
      %s182 = sor.u32 %s180, %s181
      %p183 = scmp.eq.s32.totalorder %s182, 0
      %s185 = sadd.s32 %s184, 1
      %s186 = scalar_select %p183, %s184, %s185
      %p189 = pneg %p183
      %p190 = scmp.eq.s32.totalorder %s22, 1
      %p191 = por %p189, %p190
      %p192 = scmp.ne.s32.totalorder %s184, %s187
      %p193 = scmp.eq.s32.totalorder %s22, 0
      %p194 = por %p192, %p193
      %p195 = scmp.ne.s32.totalorder %s184, %s187
      %p196 = scmp.eq.s32.totalorder %s27, 1
      %p197 = por %p195, %p196
      %p198 = scmp.ne.s32.totalorder %s187, %s188
      %p199 = scmp.eq.s32.totalorder %s27, 0
      %p200 = por %p198, %p199
      %p201 = scmp.ne.s32.totalorder %s187, %s188
      %p202 = scmp.eq.s32.totalorder %s28, 1
      %p203 = por %p201, %p202
      %p205 = scmp.ne.s32.totalorder %s188, %s204
      %p206 = scmp.eq.s32.totalorder %s28, 0
      %p207 = por %p205, %p206
      %p208 = scmp.le.s32.totalorder 1, %s22
      %p209 = scmp.lt.s32.totalorder %s22, 3
      %p210 = pnand %p208, %p209
      %p211 = pneg %p210
      // Predicated region
      $region9: #{tpu_custom_call.1} parent=5 // pred_check
        _
      $region10: #{tpu_custom_call.1} parent=5 // pred_check_branch
        %213 = sbr.rel (%p210) target = $region12
      $region11: #{tpu_custom_call.1} parent=5 // pred_region
        %s214 = ssub.s32 %s22, 1
        // Predicated region
        $region13: #{tpu_custom_call.1} parent=11 // pred_check
          %p215 = pneg %p109
        $region14: #{tpu_custom_call.1} parent=11 // pred_check_branch
          %217 = sbr.rel (%p215) target = $region16
        $region15: #{tpu_custom_call.1} parent=11 // pred_region
          %s219 = ssub.s32 512, 512
          %220 = vsyncadd [#allocation7], %s219
          %s221 = sshll.u32 [#allocation8], 4
          %s222 = int_to_ptr.vmem [resolvable:$true] %s221
          %227 = dma.hbm_to_vmem [thread:$0]  %s2, 512, %s222, [#allocation7], 128, 128, 8
        $region16: #{tpu_custom_call.1} parent=11 // pred_fallthru
          _
        // Predicated region
        $region17: #{tpu_custom_call.1} parent=11 // pred_check
          %p228 = pneg %p130
        $region18: #{tpu_custom_call.1} parent=11 // pred_check_branch
          %230 = sbr.rel (%p228) target = $region20
        $region19: #{tpu_custom_call.1} parent=11 // pred_region
          %s232 = ssub.s32 512, 512
          %233 = vsyncadd [#allocation10], %s232
          %s234 = sshll.u32 [#allocation9], 4
          %s235 = int_to_ptr.vmem [resolvable:$true] %s234
          %240 = dma.hbm_to_vmem [thread:$0]  %s3, 512, %s235, [#allocation10], 128, 128, 8
        $region20: #{tpu_custom_call.1} parent=11 // pred_fallthru
          _
        // Predicated region
        $region21: #{tpu_custom_call.1} parent=11 // pred_check
          %p241 = pneg %p151
        $region22: #{tpu_custom_call.1} parent=11 // pred_check_branch
          %243 = sbr.rel (%p241) target = $region24
        $region23: #{tpu_custom_call.1} parent=11 // pred_region
          _
        $region24: #{tpu_custom_call.1} parent=11 // pred_fallthru
          _
        // Predicated region
        $region25: #{tpu_custom_call.1} parent=11 // pred_check
          %p244 = pneg %p172
        $region26: #{tpu_custom_call.1} parent=11 // pred_check_branch
          %246 = sbr.rel (%p244) target = $region28
        $region27: #{tpu_custom_call.1} parent=11 // pred_region
          _
        $region28: #{tpu_custom_call.1} parent=11 // pred_fallthru
          _
      $region12: #{tpu_custom_call.1} parent=5 // pred_fallthru
        _
      %p247 = scmp.lt.s32.totalorder %s22, 2
      // Predicated region
      $region29: #{tpu_custom_call.1} parent=5 // pred_check
        %p248 = pneg %p247
      $region30: #{tpu_custom_call.1} parent=5 // pred_check_branch
        %250 = sbr.rel (%p248) target = $region32
      $region31: #{tpu_custom_call.1} parent=5 // pred_region
        // Predicated region
        $region33: #{tpu_custom_call.1} parent=31 // pred_check
          %p251 = pneg %p54
        $region34: #{tpu_custom_call.1} parent=31 // pred_check_branch
          %253 = sbr.rel (%p251) target = $region36
        $region35: #{tpu_custom_call.1} parent=31 // pred_region
          %s254 = sand.u32 %s44, 1
          %s255 = scalar_lea.sflag [#allocation4], %s254
          %s256 = sand.u32 %s44, 1
          %s257 = smul.addr %s256, 8
          %s258 = scalar_lea.vmem [#allocation3], %s257
          %s260 = ssub.s32 128, 128
          %261 = vsyncadd %s255, %s260
          %s262 = smul.addr %s29, 128
          %s263 = scalar_lea.hbm %s0, %s262
          %s265 = sshll.u32 %s258, 4
          %s266 = int_to_ptr.vmem [resolvable:$true] %s265
          %268 = dma.hbm_to_vmem [thread:$0]  %s263, 128, %s266, %s255
        $region36: #{tpu_custom_call.1} parent=31 // pred_fallthru
          _
        // Predicated region
        $region37: #{tpu_custom_call.1} parent=31 // pred_check
          %p269 = pneg %p82
        $region38: #{tpu_custom_call.1} parent=31 // pred_check_branch
          %271 = sbr.rel (%p269) target = $region40
        $region39: #{tpu_custom_call.1} parent=31 // pred_region
          %s272 = sand.u32 %s22, 1
          %s273 = scalar_lea.sflag [#allocation7], %s272
          %s274 = sand.u32 %s72, 1
          %s275 = smul.addr %s274, 8
          %s276 = scalar_lea.vmem [#allocation6], %s275
          %s278 = ssub.s32 128, 128
          %279 = vsyncadd %s273, %s278
          %s280 = sadd.s32 %s30, %s29
          %s281 = smul.addr %s280, 128
          %s282 = scalar_lea.hbm %s1, %s281
          %s284 = sshll.u32 %s276, 4
          %s285 = int_to_ptr.vmem [resolvable:$true] %s284
          %287 = dma.hbm_to_vmem [thread:$0]  %s282, 128, %s285, %s273
        $region40: #{tpu_custom_call.1} parent=31 // pred_fallthru
          _
      $region32: #{tpu_custom_call.1} parent=5 // pred_fallthru
        _
      %p288 = scmp.le.s32.totalorder 1, %s22
      %p289 = scmp.lt.s32.totalorder %s22, 3
      %p290 = pnand %p288, %p289
      %p291 = pneg %p290
      // Predicated region
      $region41: #{tpu_custom_call.1} parent=5 // pred_check
        _
      $region42: #{tpu_custom_call.1} parent=5 // pred_check_branch
        %293 = sbr.rel (%p290) target = $region44
      $region43: #{tpu_custom_call.1} parent=5 // pred_region
        %s294 = ssub.s32 %s22, 1
        %s295 = sand.u32 %s47, 1
        %s296 = scalar_lea.sflag [#allocation4], %s295
        %s297 = sand.u32 %s47, 1
        %s298 = smul.addr %s297, 8
        %s299 = scalar_lea.vmem [#allocation3], %s298
        // Predicated region
        $region45: #{tpu_custom_call.1} parent=43 // pred_check
          %p300 = pneg %p60
        $region46: #{tpu_custom_call.1} parent=43 // pred_check_branch
          %302 = sbr.rel (%p300) target = $region48
        $region47: #{tpu_custom_call.1} parent=43 // pred_region
          %303 = dma.done %s296, 128
        $region48: #{tpu_custom_call.1} parent=43 // pred_fallthru
          _
        %s304 = sand.u32 %s27, 1
        %s305 = scalar_lea.sflag [#allocation7], %s304
        %s306 = sand.u32 %s75, 1
        %s307 = smul.addr %s306, 8
        %s308 = scalar_lea.vmem [#allocation6], %s307
        // Predicated region
        $region49: #{tpu_custom_call.1} parent=43 // pred_check
          %p309 = pneg %p88
        $region50: #{tpu_custom_call.1} parent=43 // pred_check_branch
          %311 = sbr.rel (%p309) target = $region52
        $region51: #{tpu_custom_call.1} parent=43 // pred_region
          %312 = dma.done %s305, 128
        $region52: #{tpu_custom_call.1} parent=43 // pred_fallthru
          _
        // Predicated region
        $region53: #{tpu_custom_call.1} parent=43 // pred_check
          %p313 = pneg %p109
        $region54: #{tpu_custom_call.1} parent=43 // pred_check_branch
          %315 = sbr.rel (%p313) target = $region56
        $region55: #{tpu_custom_call.1} parent=43 // pred_region
          %316 = dma.done [#allocation7], 512
        $region56: #{tpu_custom_call.1} parent=43 // pred_fallthru
          _
        // Predicated region
        $region57: #{tpu_custom_call.1} parent=43 // pred_check
          %p317 = pneg %p130
        $region58: #{tpu_custom_call.1} parent=43 // pred_check_branch
          %319 = sbr.rel (%p317) target = $region60
        $region59: #{tpu_custom_call.1} parent=43 // pred_region
          %320 = dma.done [#allocation10], 512
        $region60: #{tpu_custom_call.1} parent=43 // pred_fallthru
          _
        %s321 = sand.u32 %s47, 1
        %s322 = scalar_lea.sflag [#allocation4], %s321
        %s323 = sand.u32 %s47, 1
        %s324 = smul.addr %s323, 8
        %s325 = scalar_lea.vmem [#allocation3], %s324
        %p326 = pneg %p60
        %p327 = pneg %p57
        %s328 = sand.u32 %s27, 1
        %s329 = scalar_lea.sflag [#allocation7], %s328
        %s330 = sand.u32 %s75, 1
        %s331 = smul.addr %s330, 8
        %s332 = scalar_lea.vmem [#allocation6], %s331
        %p333 = pneg %p88
        %p334 = pneg %p85
        %p335 = pneg %p109
        %p336 = pneg %p106
        %p337 = pneg %p130
        %p338 = pneg %p127
        %p339 = pneg %p151
        %p340 = pneg %p148
        %p341 = pneg %p172
        %p342 = pneg %p169
        %p343 = pneg %p200
        %p344 = pneg %p197
        %s345 = sand.u32 %s187, 1
        %s346 = scalar_lea.sflag [#allocation5], %s345
        %s347 = sand.u32 %s187, 1
        %s348 = smul.addr %s347, 8
        %s349 = scalar_lea.vmem [#allocation11], %s348
        %p350 = scmp.eq.s32.totalorder %s32, 0
        // Predicated region
        $region61: #{tpu_custom_call.1} parent=43 // pred_check
          %p351 = pneg %p350
        $region62: #{tpu_custom_call.1} parent=43 // pred_check_branch
          %353 = sbr.rel (%p351) target = $region64
        $region63: #{tpu_custom_call.1} parent=43 // pred_region
          %v354 = vld [vmem:[%s299] sm:$0xff]
          %v355 = vld [vmem:[#allocation9] sm:$0xff]
          %v356 = vld [vmem:[#allocation9 + $0x8] sm:$0xff]
          %v357 = vld [vmem:[#allocation9 + $0x10] sm:$0xff]
          %v358 = vld [vmem:[#allocation9 + $0x18] sm:$0xff]
          %v359 = vld [vmem:[%s5] sm:$0x1]
          %v361 = vlaneseq
          %v362 = vshrl.u32 %v361, 7
          %v363 = vsub.s32 0, %v362
          %v364 = vrot.slane %v359, %v363
          %vm366 = vcmask 261120
          %v368 = vsel %vm366, %v354, 0
          %370 = vmatprep.subr.mxu0 0.0
          %371 = vmatpush1.msra.mxu0 %v355
          %372 = vmatprep.subr.mxu0 0.0
          %373 = vmatpush1.msra.mxu0 %v356
          %374 = vmatprep.subr.mxu0 0.0
          %375 = vmatpush1.msra.mxu0 %v357
          %376 = vmatprep.subr.mxu0 0.0
          %377 = vmatpush1.msra.mxu0 %v358
          %378 = vmatprep.subr.mxu0 0.0
          %379 = vmatpush1.msra.mxu0 0.0
          %380 = vmatprep.subr.mxu0 0.0
          %381 = vmatpush1.msra.mxu0 0.0
          %382 = vmatprep.subr.mxu0 0.0
          %383 = vmatpush1.msra.mxu0 0.0
          %384 = vmatprep.subr.mxu0 0.0
          %385 = vmatpush1.msra.mxu0 0.0
          %386 = vmatprep.subr.mxu0 0.0
          %387 = vmatpush1.msra.mxu0 0.0
          %388 = vmatprep.subr.mxu0 0.0
          %389 = vmatpush1.msra.mxu0 0.0
          %390 = vmatprep.subr.mxu0 0.0
          %391 = vmatpush1.msra.mxu0 0.0
          %392 = vmatprep.subr.mxu0 0.0
          %393 = vmatpush1.msra.mxu0 0.0
          %394 = vmatprep.subr.mxu0 0.0
          %395 = vmatpush1.msra.mxu0 0.0
          %396 = vmatprep.subr.mxu0 0.0
          %397 = vmatpush1.msra.mxu0 0.0
          %398 = vmatprep.subr.mxu0 0.0
          %399 = vmatpush1.msra.mxu0 0.0
          %400 = vmatprep.subr.mxu0 0.0
          %401 = vmatpush1.msra.mxu0 0.0
          %402 = vmatprep.subr.mxu0 0.0
          %403 = vmatpush1.msra.mxu0 0.0
          %404 = vmatprep.subr.mxu0 0.0
          %405 = vmatpush1.msra.mxu0 0.0
          %406 = vmatprep.subr.mxu0 0.0
          %407 = vmatpush1.msra.mxu0 0.0
          %408 = vmatprep.subr.mxu0 0.0
          %409 = vmatpush1.msra.mxu0 0.0
          %410 = vmatprep.subr.mxu0 0.0
          %411 = vmatpush1.msra.mxu0 0.0
          %412 = vmatprep.subr.mxu0 0.0
          %413 = vmatpush1.msra.mxu0 0.0
          %414 = vmatprep.subr.mxu0 0.0
          %415 = vmatpush1.msra.mxu0 0.0
          %416 = vmatprep.subr.mxu0 0.0
          %417 = vmatpush1.msra.mxu0 0.0
          %418 = vmatprep.subr.mxu0 0.0
          %419 = vmatpush1.msra.mxu0 0.0
          %420 = vmatprep.subr.mxu0 0.0
          %421 = vmatpush1.msra.mxu0 0.0
          %422 = vmatprep.subr.mxu0 0.0
          %423 = vmatpush1.msra.mxu0 0.0
          %424 = vmatprep.subr.mxu0 0.0
          %425 = vmatpush1.msra.mxu0 0.0
          %426 = vmatprep.subr.mxu0 0.0
          %427 = vmatpush1.msra.mxu0 0.0
          %428 = vmatprep.subr.mxu0 0.0
          %429 = vmatpush1.msra.mxu0 0.0
          %430 = vmatprep.subr.mxu0 0.0
          %431 = vmatpush1.msra.mxu0 0.0
          %432 = vmatprep.subr.mxu0 0.0
          %433 = vmatpush1.msra.mxu0 0.0
          %434 = vmatprep.mubr.f32.mxu0 0.0
          %435 = vmatmul.mubr.f32.gmra.mrb[0].mxu0 %v368
          %v436 = vpop.f32.mrb[0].mxu0
          %v437 = vadd.f32 %v364, %v436
          %v438 = vpop.f32.mrb[0].mxu0
          %439 = vdwg.mxu0
          %440 = vxpose.xlu0.b32.start [1/16] %v437, 128
          %441 = vxpose.xlu0.b32.cont [2/16] 0.0, 128
          %442 = vxpose.xlu0.b32.cont [3/16] 0.0, 128
          %443 = vxpose.xlu0.b32.cont [4/16] 0.0, 128
          %444 = vxpose.xlu0.b32.cont [5/16] 0.0, 128
          %445 = vxpose.xlu0.b32.cont [6/16] 0.0, 128
          %446 = vxpose.xlu0.b32.cont [7/16] 0.0, 128
          %447 = vxpose.xlu0.b32.cont [8/16] 0.0, 128
          %448 = vxpose.xlu0.b32.cont [9/16] 0.0, 128
          %449 = vxpose.xlu0.b32.cont [10/16] 0.0, 128
          %450 = vxpose.xlu0.b32.cont [11/16] 0.0, 128
          %451 = vxpose.xlu0.b32.cont [12/16] 0.0, 128
          %452 = vxpose.xlu0.b32.cont [13/16] 0.0, 128
          %453 = vxpose.xlu0.b32.cont [14/16] 0.0, 128
          %454 = vxpose.xlu0.b32.cont [15/16] 0.0, 128
          %455 = vxpose.xlu0.b32.end [16/16] 0.0, 128
          %v456 = vpop.trf.xlu0
          %v457 = vpop.trf.xlu0
          %v458 = vpop.trf.xlu0
          %v459 = vpop.trf.xlu0
          %v460 = vpop.trf.xlu0
          %v461 = vpop.trf.xlu0
          %v462 = vpop.trf.xlu0
          %v463 = vpop.trf.xlu0
          %v464 = vpop.trf.xlu0
          %v465 = vpop.trf.xlu0
          %v466 = vpop.trf.xlu0
          %v467 = vpop.trf.xlu0
          %v468 = vpop.trf.xlu0
          %v469 = vpop.trf.xlu0
          %v470 = vpop.trf.xlu0
          %v471 = vpop.trf.xlu0
          %473 = vrot.lane.b32.xlu0 %v437, 96
          %v474 = vpop.permute.xlu0 %473
          %vm476 = vcmask 64512
          %v478 = vsel %vm476, %v456, 0
          %480 = vmatprep.subr.mxu0 0.0
          %481 = vmatpush1.msra.mxu0 %v474
          %482 = vmatprep.subr.mxu0 0.0
          %483 = vmatpush1.msra.mxu0 0.0
          %484 = vmatprep.subr.mxu0 0.0
          %485 = vmatpush1.msra.mxu0 0.0
          %486 = vmatprep.subr.mxu0 0.0
          %487 = vmatpush1.msra.mxu0 0.0
          %488 = vmatprep.subr.mxu0 0.0
          %489 = vmatpush1.msra.mxu0 0.0
          %490 = vmatprep.subr.mxu0 0.0
          %491 = vmatpush1.msra.mxu0 0.0
          %492 = vmatprep.subr.mxu0 0.0
          %493 = vmatpush1.msra.mxu0 0.0
          %494 = vmatprep.subr.mxu0 0.0
          %495 = vmatpush1.msra.mxu0 0.0
          %496 = vmatprep.subr.mxu0 0.0
          %497 = vmatpush1.msra.mxu0 0.0
          %498 = vmatprep.subr.mxu0 0.0
          %499 = vmatpush1.msra.mxu0 0.0
          %500 = vmatprep.subr.mxu0 0.0
          %501 = vmatpush1.msra.mxu0 0.0
          %502 = vmatprep.subr.mxu0 0.0
          %503 = vmatpush1.msra.mxu0 0.0
          %504 = vmatprep.subr.mxu0 0.0
          %505 = vmatpush1.msra.mxu0 0.0
          %506 = vmatprep.subr.mxu0 0.0
          %507 = vmatpush1.msra.mxu0 0.0
          %508 = vmatprep.subr.mxu0 0.0
          %509 = vmatpush1.msra.mxu0 0.0
          %510 = vmatprep.subr.mxu0 0.0
          %511 = vmatpush1.msra.mxu0 0.0
          %512 = vmatprep.subr.mxu0 0.0
          %513 = vmatpush1.msra.mxu0 0.0
          %514 = vmatprep.subr.mxu0 0.0
          %515 = vmatpush1.msra.mxu0 0.0
          %516 = vmatprep.subr.mxu0 0.0
          %517 = vmatpush1.msra.mxu0 0.0
          %518 = vmatprep.subr.mxu0 0.0
          %519 = vmatpush1.msra.mxu0 0.0
          %520 = vmatprep.subr.mxu0 0.0
          %521 = vmatpush1.msra.mxu0 0.0
          %522 = vmatprep.subr.mxu0 0.0
          %523 = vmatpush1.msra.mxu0 0.0
          %524 = vmatprep.subr.mxu0 0.0
          %525 = vmatpush1.msra.mxu0 0.0
          %526 = vmatprep.subr.mxu0 0.0
          %527 = vmatpush1.msra.mxu0 0.0
          %528 = vmatprep.subr.mxu0 0.0
          %529 = vmatpush1.msra.mxu0 0.0
          %530 = vmatprep.subr.mxu0 0.0
          %531 = vmatpush1.msra.mxu0 0.0
          %532 = vmatprep.subr.mxu0 0.0
          %533 = vmatpush1.msra.mxu0 0.0
          %534 = vmatprep.subr.mxu0 0.0
          %535 = vmatpush1.msra.mxu0 0.0
          %536 = vmatprep.subr.mxu0 0.0
          %537 = vmatpush1.msra.mxu0 0.0
          %538 = vmatprep.subr.mxu0 0.0
          %539 = vmatpush1.msra.mxu0 0.0
          %540 = vmatprep.subr.mxu0 0.0
          %541 = vmatpush1.msra.mxu0 0.0
          %542 = vmatprep.subr.mxu0 0.0
          %543 = vmatpush1.msra.mxu0 0.0
          %544 = vmatprep.mubr.f32.mxu0 0.0
          %545 = vmatmul.mubr.f32.gmra.mrb[0].mxu0 %v478
          %v546 = vpop.f32.mrb[0].mxu0
          %v547 = vadd.f32 0.0, %v546
          %v548 = vpop.f32.mrb[0].mxu0
          %549 = vdwg.mxu0
          %550 = vst.msk [vmem:[#allocation2] sm:$0xff] %vm476, %v547
          %551 = vrot.lane.b32.xlu0 %v437, 120
          %v552 = vpop.permute.xlu0 %551
          %554 = vxpose.xlu0.b32.start [1/16] %v552, 128
          %555 = vxpose.xlu0.b32.cont [2/16] 0.0, 128
          %556 = vxpose.xlu0.b32.cont [3/16] 0.0, 128
          %557 = vxpose.xlu0.b32.cont [4/16] 0.0, 128
          %558 = vxpose.xlu0.b32.cont [5/16] 0.0, 128
          %559 = vxpose.xlu0.b32.cont [6/16] 0.0, 128
          %560 = vxpose.xlu0.b32.cont [7/16] 0.0, 128
          %561 = vxpose.xlu0.b32.cont [8/16] 0.0, 128
          %562 = vxpose.xlu0.b32.cont [9/16] 0.0, 128
          %563 = vxpose.xlu0.b32.cont [10/16] 0.0, 128
          %564 = vxpose.xlu0.b32.cont [11/16] 0.0, 128
          %565 = vxpose.xlu0.b32.cont [12/16] 0.0, 128
          %566 = vxpose.xlu0.b32.cont [13/16] 0.0, 128
          %567 = vxpose.xlu0.b32.cont [14/16] 0.0, 128
          %568 = vxpose.xlu0.b32.cont [15/16] 0.0, 128
          %569 = vxpose.xlu0.b32.end [16/16] 0.0, 128
          %v570 = vpop.trf.xlu0
          %v571 = vpop.trf.xlu0
          %v572 = vpop.trf.xlu0
          %v573 = vpop.trf.xlu0
          %v574 = vpop.trf.xlu0
          %v575 = vpop.trf.xlu0
          %v576 = vpop.trf.xlu0
          %v577 = vpop.trf.xlu0
          %v578 = vpop.trf.xlu0
          %v579 = vpop.trf.xlu0
          %v580 = vpop.trf.xlu0
          %v581 = vpop.trf.xlu0
          %v582 = vpop.trf.xlu0
          %v583 = vpop.trf.xlu0
          %v584 = vpop.trf.xlu0
          %v585 = vpop.trf.xlu0
          %586 = vrot.lane.b32.xlu0 %v437, 88
          %v587 = vpop.permute.xlu0 %586
          %v590 = vsel %vm476, %v570, 0
          %592 = vmatprep.subr.mxu0 0.0
          %593 = vmatpush1.msra.mxu0 %v587
          %594 = vmatprep.subr.mxu0 0.0
          %595 = vmatpush1.msra.mxu0 0.0
          %596 = vmatprep.subr.mxu0 0.0
          %597 = vmatpush1.msra.mxu0 0.0
          %598 = vmatprep.subr.mxu0 0.0
          %599 = vmatpush1.msra.mxu0 0.0
          %600 = vmatprep.subr.mxu0 0.0
          %601 = vmatpush1.msra.mxu0 0.0
          %602 = vmatprep.subr.mxu0 0.0
          %603 = vmatpush1.msra.mxu0 0.0
          %604 = vmatprep.subr.mxu0 0.0
          %605 = vmatpush1.msra.mxu0 0.0
          %606 = vmatprep.subr.mxu0 0.0
          %607 = vmatpush1.msra.mxu0 0.0
          %608 = vmatprep.subr.mxu0 0.0
          %609 = vmatpush1.msra.mxu0 0.0
          %610 = vmatprep.subr.mxu0 0.0
          %611 = vmatpush1.msra.mxu0 0.0
          %612 = vmatprep.subr.mxu0 0.0
          %613 = vmatpush1.msra.mxu0 0.0
          %614 = vmatprep.subr.mxu0 0.0
          %615 = vmatpush1.msra.mxu0 0.0
          %616 = vmatprep.subr.mxu0 0.0
          %617 = vmatpush1.msra.mxu0 0.0
          %618 = vmatprep.subr.mxu0 0.0
          %619 = vmatpush1.msra.mxu0 0.0
          %620 = vmatprep.subr.mxu0 0.0
          %621 = vmatpush1.msra.mxu0 0.0
          %622 = vmatprep.subr.mxu0 0.0
          %623 = vmatpush1.msra.mxu0 0.0
          %624 = vmatprep.subr.mxu0 0.0
          %625 = vmatpush1.msra.mxu0 0.0
          %626 = vmatprep.subr.mxu0 0.0
          %627 = vmatpush1.msra.mxu0 0.0
          %628 = vmatprep.subr.mxu0 0.0
          %629 = vmatpush1.msra.mxu0 0.0
          %630 = vmatprep.subr.mxu0 0.0
          %631 = vmatpush1.msra.mxu0 0.0
          %632 = vmatprep.subr.mxu0 0.0
          %633 = vmatpush1.msra.mxu0 0.0
          %634 = vmatprep.subr.mxu0 0.0
          %635 = vmatpush1.msra.mxu0 0.0
          %636 = vmatprep.subr.mxu0 0.0
          %637 = vmatpush1.msra.mxu0 0.0
          %638 = vmatprep.subr.mxu0 0.0
          %639 = vmatpush1.msra.mxu0 0.0
          %640 = vmatprep.subr.mxu0 0.0
          %641 = vmatpush1.msra.mxu0 0.0
          %642 = vmatprep.subr.mxu0 0.0
          %643 = vmatpush1.msra.mxu0 0.0
          %644 = vmatprep.subr.mxu0 0.0
          %645 = vmatpush1.msra.mxu0 0.0
          %646 = vmatprep.subr.mxu0 0.0
          %647 = vmatpush1.msra.mxu0 0.0
          %648 = vmatprep.subr.mxu0 0.0
          %649 = vmatpush1.msra.mxu0 0.0
          %650 = vmatprep.subr.mxu0 0.0
          %651 = vmatpush1.msra.mxu0 0.0
          %652 = vmatprep.subr.mxu0 0.0
          %653 = vmatpush1.msra.mxu0 0.0
          %654 = vmatprep.subr.mxu0 0.0
          %655 = vmatpush1.msra.mxu0 0.0
          %656 = vmatprep.mubr.f32.mxu0 0.0
          %657 = vmatmul.mubr.f32.gmra.mrb[0].mxu0 %v590
          %v658 = vpop.f32.mrb[0].mxu0
          %v659 = vadd.f32 0.0, %v658
          %v660 = vpop.f32.mrb[0].mxu0
          %661 = vdwg.mxu0
          %662 = vst.msk [vmem:[#allocation2 + $0x8] sm:$0xff] %vm476, %v659
          %663 = vrot.lane.b32.xlu0 %v437, 112
          %v664 = vpop.permute.xlu0 %663
          %666 = vxpose.xlu0.b32.start [1/16] %v664, 128
          %667 = vxpose.xlu0.b32.cont [2/16] 0.0, 128
          %668 = vxpose.xlu0.b32.cont [3/16] 0.0, 128
          %669 = vxpose.xlu0.b32.cont [4/16] 0.0, 128
          %670 = vxpose.xlu0.b32.cont [5/16] 0.0, 128
          %671 = vxpose.xlu0.b32.cont [6/16] 0.0, 128
          %672 = vxpose.xlu0.b32.cont [7/16] 0.0, 128
          %673 = vxpose.xlu0.b32.cont [8/16] 0.0, 128
          %674 = vxpose.xlu0.b32.cont [9/16] 0.0, 128
          %675 = vxpose.xlu0.b32.cont [10/16] 0.0, 128
          %676 = vxpose.xlu0.b32.cont [11/16] 0.0, 128
          %677 = vxpose.xlu0.b32.cont [12/16] 0.0, 128
          %678 = vxpose.xlu0.b32.cont [13/16] 0.0, 128
          %679 = vxpose.xlu0.b32.cont [14/16] 0.0, 128
          %680 = vxpose.xlu0.b32.cont [15/16] 0.0, 128
          %681 = vxpose.xlu0.b32.end [16/16] 0.0, 128
          %v682 = vpop.trf.xlu0
          %v683 = vpop.trf.xlu0
          %v684 = vpop.trf.xlu0
          %v685 = vpop.trf.xlu0
          %v686 = vpop.trf.xlu0
          %v687 = vpop.trf.xlu0
          %v688 = vpop.trf.xlu0
          %v689 = vpop.trf.xlu0
          %v690 = vpop.trf.xlu0
          %v691 = vpop.trf.xlu0
          %v692 = vpop.trf.xlu0
          %v693 = vpop.trf.xlu0
          %v694 = vpop.trf.xlu0
          %v695 = vpop.trf.xlu0
          %v696 = vpop.trf.xlu0
          %v697 = vpop.trf.xlu0
          %698 = vrot.lane.b32.xlu0 %v437, 80
          %v699 = vpop.permute.xlu0 %698
          %v702 = vsel %vm476, %v682, 0
          %704 = vmatprep.subr.mxu0 0.0
          %705 = vmatpush1.msra.mxu0 %v699
          %706 = vmatprep.subr.mxu0 0.0
          %707 = vmatpush1.msra.mxu0 0.0
          %708 = vmatprep.subr.mxu0 0.0
          %709 = vmatpush1.msra.mxu0 0.0
          %710 = vmatprep.subr.mxu0 0.0
          %711 = vmatpush1.msra.mxu0 0.0
          %712 = vmatprep.subr.mxu0 0.0
          %713 = vmatpush1.msra.mxu0 0.0
          %714 = vmatprep.subr.mxu0 0.0
          %715 = vmatpush1.msra.mxu0 0.0
          %716 = vmatprep.subr.mxu0 0.0
          %717 = vmatpush1.msra.mxu0 0.0
          %718 = vmatprep.subr.mxu0 0.0
          %719 = vmatpush1.msra.mxu0 0.0
          %720 = vmatprep.subr.mxu0 0.0
          %721 = vmatpush1.msra.mxu0 0.0
          %722 = vmatprep.subr.mxu0 0.0
          %723 = vmatpush1.msra.mxu0 0.0
          %724 = vmatprep.subr.mxu0 0.0
          %725 = vmatpush1.msra.mxu0 0.0
          %726 = vmatprep.subr.mxu0 0.0
          %727 = vmatpush1.msra.mxu0 0.0
          %728 = vmatprep.subr.mxu0 0.0
          %729 = vmatpush1.msra.mxu0 0.0
          %730 = vmatprep.subr.mxu0 0.0
          %731 = vmatpush1.msra.mxu0 0.0
          %732 = vmatprep.subr.mxu0 0.0
          %733 = vmatpush1.msra.mxu0 0.0
          %734 = vmatprep.subr.mxu0 0.0
          %735 = vmatpush1.msra.mxu0 0.0
          %736 = vmatprep.subr.mxu0 0.0
          %737 = vmatpush1.msra.mxu0 0.0
          %738 = vmatprep.subr.mxu0 0.0
          %739 = vmatpush1.msra.mxu0 0.0
          %740 = vmatprep.subr.mxu0 0.0
          %741 = vmatpush1.msra.mxu0 0.0
          %742 = vmatprep.subr.mxu0 0.0
          %743 = vmatpush1.msra.mxu0 0.0
          %744 = vmatprep.subr.mxu0 0.0
          %745 = vmatpush1.msra.mxu0 0.0
          %746 = vmatprep.subr.mxu0 0.0
          %747 = vmatpush1.msra.mxu0 0.0
          %748 = vmatprep.subr.mxu0 0.0
          %749 = vmatpush1.msra.mxu0 0.0
          %750 = vmatprep.subr.mxu0 0.0
          %751 = vmatpush1.msra.mxu0 0.0
          %752 = vmatprep.subr.mxu0 0.0
          %753 = vmatpush1.msra.mxu0 0.0
          %754 = vmatprep.subr.mxu0 0.0
          %755 = vmatpush1.msra.mxu0 0.0
          %756 = vmatprep.subr.mxu0 0.0
          %757 = vmatpush1.msra.mxu0 0.0
          %758 = vmatprep.subr.mxu0 0.0
          %759 = vmatpush1.msra.mxu0 0.0
          %760 = vmatprep.subr.mxu0 0.0
          %761 = vmatpush1.msra.mxu0 0.0
          %762 = vmatprep.subr.mxu0 0.0
          %763 = vmatpush1.msra.mxu0 0.0
          %764 = vmatprep.subr.mxu0 0.0
          %765 = vmatpush1.msra.mxu0 0.0
          %766 = vmatprep.subr.mxu0 0.0
          %767 = vmatpush1.msra.mxu0 0.0
          %768 = vmatprep.mubr.f32.mxu0 0.0
          %769 = vmatmul.mubr.f32.gmra.mrb[0].mxu0 %v702
          %v770 = vpop.f32.mrb[0].mxu0
          %v771 = vadd.f32 0.0, %v770
          %v772 = vpop.f32.mrb[0].mxu0
          %773 = vdwg.mxu0
          %774 = vst.msk [vmem:[#allocation2 + $0x10] sm:$0xff] %vm476, %v771
          %775 = vrot.lane.b32.xlu0 %v437, 104
          %v776 = vpop.permute.xlu0 %775
          %778 = vxpose.xlu0.b32.start [1/16] %v776, 128
          %779 = vxpose.xlu0.b32.cont [2/16] 0.0, 128
          %780 = vxpose.xlu0.b32.cont [3/16] 0.0, 128
          %781 = vxpose.xlu0.b32.cont [4/16] 0.0, 128
          %782 = vxpose.xlu0.b32.cont [5/16] 0.0, 128
          %783 = vxpose.xlu0.b32.cont [6/16] 0.0, 128
          %784 = vxpose.xlu0.b32.cont [7/16] 0.0, 128
          %785 = vxpose.xlu0.b32.cont [8/16] 0.0, 128
          %786 = vxpose.xlu0.b32.cont [9/16] 0.0, 128
          %787 = vxpose.xlu0.b32.cont [10/16] 0.0, 128
          %788 = vxpose.xlu0.b32.cont [11/16] 0.0, 128
          %789 = vxpose.xlu0.b32.cont [12/16] 0.0, 128
          %790 = vxpose.xlu0.b32.cont [13/16] 0.0, 128
          %791 = vxpose.xlu0.b32.cont [14/16] 0.0, 128
          %792 = vxpose.xlu0.b32.cont [15/16] 0.0, 128
          %793 = vxpose.xlu0.b32.end [16/16] 0.0, 128
          %v794 = vpop.trf.xlu0
          %v795 = vpop.trf.xlu0
          %v796 = vpop.trf.xlu0
          %v797 = vpop.trf.xlu0
          %v798 = vpop.trf.xlu0
          %v799 = vpop.trf.xlu0
          %v800 = vpop.trf.xlu0
          %v801 = vpop.trf.xlu0
          %v802 = vpop.trf.xlu0
          %v803 = vpop.trf.xlu0
          %v804 = vpop.trf.xlu0
          %v805 = vpop.trf.xlu0
          %v806 = vpop.trf.xlu0
          %v807 = vpop.trf.xlu0
          %v808 = vpop.trf.xlu0
          %v809 = vpop.trf.xlu0
          %810 = vrot.lane.b32.xlu0 %v437, 72
          %v811 = vpop.permute.xlu0 %810
          %v814 = vsel %vm476, %v794, 0
          %816 = vmatprep.subr.mxu0 0.0
          %817 = vmatpush1.msra.mxu0 %v811
          %818 = vmatprep.subr.mxu0 0.0
          %819 = vmatpush1.msra.mxu0 0.0
          %820 = vmatprep.subr.mxu0 0.0
          %821 = vmatpush1.msra.mxu0 0.0
          %822 = vmatprep.subr.mxu0 0.0
          %823 = vmatpush1.msra.mxu0 0.0
          %824 = vmatprep.subr.mxu0 0.0
          %825 = vmatpush1.msra.mxu0 0.0
          %826 = vmatprep.subr.mxu0 0.0
          %827 = vmatpush1.msra.mxu0 0.0
          %828 = vmatprep.subr.mxu0 0.0
          %829 = vmatpush1.msra.mxu0 0.0
          %830 = vmatprep.subr.mxu0 0.0
          %831 = vmatpush1.msra.mxu0 0.0
          %832 = vmatprep.subr.mxu0 0.0
          %833 = vmatpush1.msra.mxu0 0.0
          %834 = vmatprep.subr.mxu0 0.0
          %835 = vmatpush1.msra.mxu0 0.0
          %836 = vmatprep.subr.mxu0 0.0
          %837 = vmatpush1.msra.mxu0 0.0
          %838 = vmatprep.subr.mxu0 0.0
          %839 = vmatpush1.msra.mxu0 0.0
          %840 = vmatprep.subr.mxu0 0.0
          %841 = vmatpush1.msra.mxu0 0.0
          %842 = vmatprep.subr.mxu0 0.0
          %843 = vmatpush1.msra.mxu0 0.0
          %844 = vmatprep.subr.mxu0 0.0
          %845 = vmatpush1.msra.mxu0 0.0
          %846 = vmatprep.subr.mxu0 0.0
          %847 = vmatpush1.msra.mxu0 0.0
          %848 = vmatprep.subr.mxu0 0.0
          %849 = vmatpush1.msra.mxu0 0.0
          %850 = vmatprep.subr.mxu0 0.0
          %851 = vmatpush1.msra.mxu0 0.0
          %852 = vmatprep.subr.mxu0 0.0
          %853 = vmatpush1.msra.mxu0 0.0
          %854 = vmatprep.subr.mxu0 0.0
          %855 = vmatpush1.msra.mxu0 0.0
          %856 = vmatprep.subr.mxu0 0.0
          %857 = vmatpush1.msra.mxu0 0.0
          %858 = vmatprep.subr.mxu0 0.0
          %859 = vmatpush1.msra.mxu0 0.0
          %860 = vmatprep.subr.mxu0 0.0
          %861 = vmatpush1.msra.mxu0 0.0
          %862 = vmatprep.subr.mxu0 0.0
          %863 = vmatpush1.msra.mxu0 0.0
          %864 = vmatprep.subr.mxu0 0.0
          %865 = vmatpush1.msra.mxu0 0.0
          %866 = vmatprep.subr.mxu0 0.0
          %867 = vmatpush1.msra.mxu0 0.0
          %868 = vmatprep.subr.mxu0 0.0
          %869 = vmatpush1.msra.mxu0 0.0
          %870 = vmatprep.subr.mxu0 0.0
          %871 = vmatpush1.msra.mxu0 0.0
          %872 = vmatprep.subr.mxu0 0.0
          %873 = vmatpush1.msra.mxu0 0.0
          %874 = vmatprep.subr.mxu0 0.0
          %875 = vmatpush1.msra.mxu0 0.0
          %876 = vmatprep.subr.mxu0 0.0
          %877 = vmatpush1.msra.mxu0 0.0
          %878 = vmatprep.subr.mxu0 0.0
          %879 = vmatpush1.msra.mxu0 0.0
          %880 = vmatprep.mubr.f32.mxu0 0.0
          %881 = vmatmul.mubr.f32.gmra.mrb[0].mxu0 %v814
          %v882 = vpop.f32.mrb[0].mxu0
          %v883 = vadd.f32 0.0, %v882
          %v884 = vpop.f32.mrb[0].mxu0
          %885 = vdwg.mxu0
          %886 = vst.msk [vmem:[#allocation2 + $0x18] sm:$0xff] %vm476, %v883
        $region64: #{tpu_custom_call.1} parent=43 // pred_fallthru
          _
        %v887 = vld [vmem:[%s308] sm:$0xff]
        %v888 = vld [vmem:[#allocation8] sm:$0xff]
        %v889 = vld [vmem:[#allocation8 + $0x8] sm:$0xff]
        %v890 = vld [vmem:[#allocation8 + $0x10] sm:$0xff]
        %v891 = vld [vmem:[#allocation8 + $0x18] sm:$0xff]
        %v892 = vld [vmem:[%s4] sm:$0x1]
        %v894 = vlaneseq
        %v895 = vshrl.u32 %v894, 7
        %v896 = vsub.s32 0, %v895
        %v897 = vrot.slane %v892, %v896
        %vm899 = vcmask 261120
        %v901 = vsel %vm899, %v887, 0
        %903 = vmatprep.subr.mxu0 0.0
        %904 = vmatpush1.msra.mxu0 %v888
        %905 = vmatprep.subr.mxu0 0.0
        %906 = vmatpush1.msra.mxu0 %v889
        %907 = vmatprep.subr.mxu0 0.0
        %908 = vmatpush1.msra.mxu0 %v890
        %909 = vmatprep.subr.mxu0 0.0
        %910 = vmatpush1.msra.mxu0 %v891
        %911 = vmatprep.subr.mxu0 0.0
        %912 = vmatpush1.msra.mxu0 0.0
        %913 = vmatprep.subr.mxu0 0.0
        %914 = vmatpush1.msra.mxu0 0.0
        %915 = vmatprep.subr.mxu0 0.0
        %916 = vmatpush1.msra.mxu0 0.0
        %917 = vmatprep.subr.mxu0 0.0
        %918 = vmatpush1.msra.mxu0 0.0
        %919 = vmatprep.subr.mxu0 0.0
        %920 = vmatpush1.msra.mxu0 0.0
        %921 = vmatprep.subr.mxu0 0.0
        %922 = vmatpush1.msra.mxu0 0.0
        %923 = vmatprep.subr.mxu0 0.0
        %924 = vmatpush1.msra.mxu0 0.0
        %925 = vmatprep.subr.mxu0 0.0
        %926 = vmatpush1.msra.mxu0 0.0
        %927 = vmatprep.subr.mxu0 0.0
        %928 = vmatpush1.msra.mxu0 0.0
        %929 = vmatprep.subr.mxu0 0.0
        %930 = vmatpush1.msra.mxu0 0.0
        %931 = vmatprep.subr.mxu0 0.0
        %932 = vmatpush1.msra.mxu0 0.0
        %933 = vmatprep.subr.mxu0 0.0
        %934 = vmatpush1.msra.mxu0 0.0
        %935 = vmatprep.subr.mxu0 0.0
        %936 = vmatpush1.msra.mxu0 0.0
        %937 = vmatprep.subr.mxu0 0.0
        %938 = vmatpush1.msra.mxu0 0.0
        %939 = vmatprep.subr.mxu0 0.0
        %940 = vmatpush1.msra.mxu0 0.0
        %941 = vmatprep.subr.mxu0 0.0
        %942 = vmatpush1.msra.mxu0 0.0
        %943 = vmatprep.subr.mxu0 0.0
        %944 = vmatpush1.msra.mxu0 0.0
        %945 = vmatprep.subr.mxu0 0.0
        %946 = vmatpush1.msra.mxu0 0.0
        %947 = vmatprep.subr.mxu0 0.0
        %948 = vmatpush1.msra.mxu0 0.0
        %949 = vmatprep.subr.mxu0 0.0
        %950 = vmatpush1.msra.mxu0 0.0
        %951 = vmatprep.subr.mxu0 0.0
        %952 = vmatpush1.msra.mxu0 0.0
        %953 = vmatprep.subr.mxu0 0.0
        %954 = vmatpush1.msra.mxu0 0.0
        %955 = vmatprep.subr.mxu0 0.0
        %956 = vmatpush1.msra.mxu0 0.0
        %957 = vmatprep.subr.mxu0 0.0
        %958 = vmatpush1.msra.mxu0 0.0
        %959 = vmatprep.subr.mxu0 0.0
        %960 = vmatpush1.msra.mxu0 0.0
        %961 = vmatprep.subr.mxu0 0.0
        %962 = vmatpush1.msra.mxu0 0.0
        %963 = vmatprep.subr.mxu0 0.0
        %964 = vmatpush1.msra.mxu0 0.0
        %965 = vmatprep.subr.mxu0 0.0
        %966 = vmatpush1.msra.mxu0 0.0
        %967 = vmatprep.mubr.f32.mxu0 0.0
        %968 = vmatmul.mubr.f32.gmra.mrb[0].mxu0 %v901
        %v969 = vpop.f32.mrb[0].mxu0
        %v970 = vadd.f32 %v897, %v969
        %v971 = vpop.f32.mrb[0].mxu0
        %972 = vdwg.mxu0
        %v973 = vld [vmem:[#allocation2] sm:$0xff]
        %vm974 = vcmask 64512
        %v976 = vsel %vm974, %v970, 0
        %978 = vmatprep.subr.mxu0 0.0
        %979 = vmatpush1.msra.mxu0 %v973
        %980 = vmatprep.subr.mxu0 0.0
        %981 = vmatpush1.msra.mxu0 0.0
        %982 = vmatprep.subr.mxu0 0.0
        %983 = vmatpush1.msra.mxu0 0.0
        %984 = vmatprep.subr.mxu0 0.0
        %985 = vmatpush1.msra.mxu0 0.0
        %986 = vmatprep.subr.mxu0 0.0
        %987 = vmatpush1.msra.mxu0 0.0
        %988 = vmatprep.subr.mxu0 0.0
        %989 = vmatpush1.msra.mxu0 0.0
        %990 = vmatprep.subr.mxu0 0.0
        %991 = vmatpush1.msra.mxu0 0.0
        %992 = vmatprep.subr.mxu0 0.0
        %993 = vmatpush1.msra.mxu0 0.0
        %994 = vmatprep.subr.mxu0 0.0
        %995 = vmatpush1.msra.mxu0 0.0
        %996 = vmatprep.subr.mxu0 0.0
        %997 = vmatpush1.msra.mxu0 0.0
        %998 = vmatprep.subr.mxu0 0.0
        %999 = vmatpush1.msra.mxu0 0.0
        %1000 = vmatprep.subr.mxu0 0.0
        %1001 = vmatpush1.msra.mxu0 0.0
        %1002 = vmatprep.subr.mxu0 0.0
        %1003 = vmatpush1.msra.mxu0 0.0
        %1004 = vmatprep.subr.mxu0 0.0
        %1005 = vmatpush1.msra.mxu0 0.0
        %1006 = vmatprep.subr.mxu0 0.0
        %1007 = vmatpush1.msra.mxu0 0.0
        %1008 = vmatprep.subr.mxu0 0.0
        %1009 = vmatpush1.msra.mxu0 0.0
        %1010 = vmatprep.subr.mxu0 0.0
        %1011 = vmatpush1.msra.mxu0 0.0
        %1012 = vmatprep.subr.mxu0 0.0
        %1013 = vmatpush1.msra.mxu0 0.0
        %1014 = vmatprep.subr.mxu0 0.0
        %1015 = vmatpush1.msra.mxu0 0.0
        %1016 = vmatprep.subr.mxu0 0.0
        %1017 = vmatpush1.msra.mxu0 0.0
        %1018 = vmatprep.subr.mxu0 0.0
        %1019 = vmatpush1.msra.mxu0 0.0
        %1020 = vmatprep.subr.mxu0 0.0
        %1021 = vmatpush1.msra.mxu0 0.0
        %1022 = vmatprep.subr.mxu0 0.0
        %1023 = vmatpush1.msra.mxu0 0.0
        %1024 = vmatprep.subr.mxu0 0.0
        %1025 = vmatpush1.msra.mxu0 0.0
        %1026 = vmatprep.subr.mxu0 0.0
        %1027 = vmatpush1.msra.mxu0 0.0
        %1028 = vmatprep.subr.mxu0 0.0
        %1029 = vmatpush1.msra.mxu0 0.0
        %1030 = vmatprep.subr.mxu0 0.0
        %1031 = vmatpush1.msra.mxu0 0.0
        %1032 = vmatprep.subr.mxu0 0.0
        %1033 = vmatpush1.msra.mxu0 0.0
        %1034 = vmatprep.subr.mxu0 0.0
        %1035 = vmatpush1.msra.mxu0 0.0
        %1036 = vmatprep.subr.mxu0 0.0
        %1037 = vmatpush1.msra.mxu0 0.0
        %1038 = vmatprep.subr.mxu0 0.0
        %1039 = vmatpush1.msra.mxu0 0.0
        %1040 = vmatprep.subr.mxu0 0.0
        %1041 = vmatpush1.msra.mxu0 0.0
        %1042 = vmatprep.mubr.f32.mxu0 0.0
        %1043 = vmatmul.mubr.f32.gmra.mrb[0].mxu0 %v976
        %v1044 = vpop.f32.mrb[0].mxu0
        %v1045 = vadd.f32 0.0, %v1044
        %v1046 = vpop.f32.mrb[0].mxu0
        %1047 = vdwg.mxu0
        %1048 = vst.msk [vmem:[%s349] sm:$0xff] %vm974, %v1045
        %v1049 = vld [vmem:[#allocation2 + $0x8] sm:$0xff]
        %1050 = vrot.lane.b32.xlu0 %v970, 120
        %v1051 = vpop.permute.xlu0 %1050
        %v1052 = vsel %vm974, %v1051, 0
        %1054 = vmatprep.subr.mxu0 0.0
        %1055 = vmatpush1.msra.mxu0 %v1049
        %1056 = vmatprep.subr.mxu0 0.0
        %1057 = vmatpush1.msra.mxu0 0.0
        %1058 = vmatprep.subr.mxu0 0.0
        %1059 = vmatpush1.msra.mxu0 0.0
        %1060 = vmatprep.subr.mxu0 0.0
        %1061 = vmatpush1.msra.mxu0 0.0
        %1062 = vmatprep.subr.mxu0 0.0
        %1063 = vmatpush1.msra.mxu0 0.0
        %1064 = vmatprep.subr.mxu0 0.0
        %1065 = vmatpush1.msra.mxu0 0.0
        %1066 = vmatprep.subr.mxu0 0.0
        %1067 = vmatpush1.msra.mxu0 0.0
        %1068 = vmatprep.subr.mxu0 0.0
        %1069 = vmatpush1.msra.mxu0 0.0
        %1070 = vmatprep.subr.mxu0 0.0
        %1071 = vmatpush1.msra.mxu0 0.0
        %1072 = vmatprep.subr.mxu0 0.0
        %1073 = vmatpush1.msra.mxu0 0.0
        %1074 = vmatprep.subr.mxu0 0.0
        %1075 = vmatpush1.msra.mxu0 0.0
        %1076 = vmatprep.subr.mxu0 0.0
        %1077 = vmatpush1.msra.mxu0 0.0
        %1078 = vmatprep.subr.mxu0 0.0
        %1079 = vmatpush1.msra.mxu0 0.0
        %1080 = vmatprep.subr.mxu0 0.0
        %1081 = vmatpush1.msra.mxu0 0.0
        %1082 = vmatprep.subr.mxu0 0.0
        %1083 = vmatpush1.msra.mxu0 0.0
        %1084 = vmatprep.subr.mxu0 0.0
        %1085 = vmatpush1.msra.mxu0 0.0
        %1086 = vmatprep.subr.mxu0 0.0
        %1087 = vmatpush1.msra.mxu0 0.0
        %1088 = vmatprep.subr.mxu0 0.0
        %1089 = vmatpush1.msra.mxu0 0.0
        %1090 = vmatprep.subr.mxu0 0.0
        %1091 = vmatpush1.msra.mxu0 0.0
        %1092 = vmatprep.subr.mxu0 0.0
        %1093 = vmatpush1.msra.mxu0 0.0
        %1094 = vmatprep.subr.mxu0 0.0
        %1095 = vmatpush1.msra.mxu0 0.0
        %1096 = vmatprep.subr.mxu0 0.0
        %1097 = vmatpush1.msra.mxu0 0.0
        %1098 = vmatprep.subr.mxu0 0.0
        %1099 = vmatpush1.msra.mxu0 0.0
        %1100 = vmatprep.subr.mxu0 0.0
        %1101 = vmatpush1.msra.mxu0 0.0
        %1102 = vmatprep.subr.mxu0 0.0
        %1103 = vmatpush1.msra.mxu0 0.0
        %1104 = vmatprep.subr.mxu0 0.0
        %1105 = vmatpush1.msra.mxu0 0.0
        %1106 = vmatprep.subr.mxu0 0.0
        %1107 = vmatpush1.msra.mxu0 0.0
        %1108 = vmatprep.subr.mxu0 0.0
        %1109 = vmatpush1.msra.mxu0 0.0
        %1110 = vmatprep.subr.mxu0 0.0
        %1111 = vmatpush1.msra.mxu0 0.0
        %1112 = vmatprep.subr.mxu0 0.0
        %1113 = vmatpush1.msra.mxu0 0.0
        %1114 = vmatprep.subr.mxu0 0.0
        %1115 = vmatpush1.msra.mxu0 0.0
        %1116 = vmatprep.subr.mxu0 0.0
        %1117 = vmatpush1.msra.mxu0 0.0
        %1118 = vmatprep.mubr.f32.mxu0 0.0
        %1119 = vmatmul.mubr.f32.gmra.mrb[0].mxu0 %v1052
        %v1120 = vpop.f32.mrb[0].mxu0
        %v1121 = vadd.f32 0.0, %v1120
        %v1122 = vpop.f32.mrb[0].mxu0
        %1123 = vdwg.mxu0
        %1125 = vrot.lane.b32.xlu0 %v1121, 8
        %v1126 = vpop.permute.xlu0 %1125
        %vm1128 = vcmask 130112
        %1129 = vst.msk [vmem:[%s349] sm:$0xff] %vm1128, %v1126
        %v1130 = vld [vmem:[#allocation2 + $0x10] sm:$0xff]
        %1131 = vrot.lane.b32.xlu0 %v970, 112
        %v1132 = vpop.permute.xlu0 %1131
        %v1133 = vsel %vm974, %v1132, 0
        %1135 = vmatprep.subr.mxu0 0.0
        %1136 = vmatpush1.msra.mxu0 %v1130
        %1137 = vmatprep.subr.mxu0 0.0
        %1138 = vmatpush1.msra.mxu0 0.0
        %1139 = vmatprep.subr.mxu0 0.0
        %1140 = vmatpush1.msra.mxu0 0.0
        %1141 = vmatprep.subr.mxu0 0.0
        %1142 = vmatpush1.msra.mxu0 0.0
        %1143 = vmatprep.subr.mxu0 0.0
        %1144 = vmatpush1.msra.mxu0 0.0
        %1145 = vmatprep.subr.mxu0 0.0
        %1146 = vmatpush1.msra.mxu0 0.0
        %1147 = vmatprep.subr.mxu0 0.0
        %1148 = vmatpush1.msra.mxu0 0.0
        %1149 = vmatprep.subr.mxu0 0.0
        %1150 = vmatpush1.msra.mxu0 0.0
        %1151 = vmatprep.subr.mxu0 0.0
        %1152 = vmatpush1.msra.mxu0 0.0
        %1153 = vmatprep.subr.mxu0 0.0
        %1154 = vmatpush1.msra.mxu0 0.0
        %1155 = vmatprep.subr.mxu0 0.0
        %1156 = vmatpush1.msra.mxu0 0.0
        %1157 = vmatprep.subr.mxu0 0.0
        %1158 = vmatpush1.msra.mxu0 0.0
        %1159 = vmatprep.subr.mxu0 0.0
        %1160 = vmatpush1.msra.mxu0 0.0
        %1161 = vmatprep.subr.mxu0 0.0
        %1162 = vmatpush1.msra.mxu0 0.0
        %1163 = vmatprep.subr.mxu0 0.0
        %1164 = vmatpush1.msra.mxu0 0.0
        %1165 = vmatprep.subr.mxu0 0.0
        %1166 = vmatpush1.msra.mxu0 0.0
        %1167 = vmatprep.subr.mxu0 0.0
        %1168 = vmatpush1.msra.mxu0 0.0
        %1169 = vmatprep.subr.mxu0 0.0
        %1170 = vmatpush1.msra.mxu0 0.0
        %1171 = vmatprep.subr.mxu0 0.0
        %1172 = vmatpush1.msra.mxu0 0.0
        %1173 = vmatprep.subr.mxu0 0.0
        %1174 = vmatpush1.msra.mxu0 0.0
        %1175 = vmatprep.subr.mxu0 0.0
        %1176 = vmatpush1.msra.mxu0 0.0
        %1177 = vmatprep.subr.mxu0 0.0
        %1178 = vmatpush1.msra.mxu0 0.0
        %1179 = vmatprep.subr.mxu0 0.0
        %1180 = vmatpush1.msra.mxu0 0.0
        %1181 = vmatprep.subr.mxu0 0.0
        %1182 = vmatpush1.msra.mxu0 0.0
        %1183 = vmatprep.subr.mxu0 0.0
        %1184 = vmatpush1.msra.mxu0 0.0
        %1185 = vmatprep.subr.mxu0 0.0
        %1186 = vmatpush1.msra.mxu0 0.0
        %1187 = vmatprep.subr.mxu0 0.0
        %1188 = vmatpush1.msra.mxu0 0.0
        %1189 = vmatprep.subr.mxu0 0.0
        %1190 = vmatpush1.msra.mxu0 0.0
        %1191 = vmatprep.subr.mxu0 0.0
        %1192 = vmatpush1.msra.mxu0 0.0
        %1193 = vmatprep.subr.mxu0 0.0
        %1194 = vmatpush1.msra.mxu0 0.0
        %1195 = vmatprep.subr.mxu0 0.0
        %1196 = vmatpush1.msra.mxu0 0.0
        %1197 = vmatprep.subr.mxu0 0.0
        %1198 = vmatpush1.msra.mxu0 0.0
        %1199 = vmatprep.mubr.f32.mxu0 0.0
        %1200 = vmatmul.mubr.f32.gmra.mrb[0].mxu0 %v1133
        %v1201 = vpop.f32.mrb[0].mxu0
        %v1202 = vadd.f32 0.0, %v1201
        %v1203 = vpop.f32.mrb[0].mxu0
        %1204 = vdwg.mxu0
        %1206 = vrot.lane.b32.xlu0 %v1202, 16
        %v1207 = vpop.permute.xlu0 %1206
        %vm1209 = vcmask 195712
        %1210 = vst.msk [vmem:[%s349] sm:$0xff] %vm1209, %v1207
        %v1211 = vld [vmem:[#allocation2 + $0x18] sm:$0xff]
        %1212 = vrot.lane.b32.xlu0 %v970, 104
        %v1213 = vpop.permute.xlu0 %1212
        %v1214 = vsel %vm974, %v1213, 0
        %1216 = vmatprep.subr.mxu0 0.0
        %1217 = vmatpush1.msra.mxu0 %v1211
        %1218 = vmatprep.subr.mxu0 0.0
        %1219 = vmatpush1.msra.mxu0 0.0
        %1220 = vmatprep.subr.mxu0 0.0
        %1221 = vmatpush1.msra.mxu0 0.0
        %1222 = vmatprep.subr.mxu0 0.0
        %1223 = vmatpush1.msra.mxu0 0.0
        %1224 = vmatprep.subr.mxu0 0.0
        %1225 = vmatpush1.msra.mxu0 0.0
        %1226 = vmatprep.subr.mxu0 0.0
        %1227 = vmatpush1.msra.mxu0 0.0
        %1228 = vmatprep.subr.mxu0 0.0
        %1229 = vmatpush1.msra.mxu0 0.0
        %1230 = vmatprep.subr.mxu0 0.0
        %1231 = vmatpush1.msra.mxu0 0.0
        %1232 = vmatprep.subr.mxu0 0.0
        %1233 = vmatpush1.msra.mxu0 0.0
        %1234 = vmatprep.subr.mxu0 0.0
        %1235 = vmatpush1.msra.mxu0 0.0
        %1236 = vmatprep.subr.mxu0 0.0
        %1237 = vmatpush1.msra.mxu0 0.0
        %1238 = vmatprep.subr.mxu0 0.0
        %1239 = vmatpush1.msra.mxu0 0.0
        %1240 = vmatprep.subr.mxu0 0.0
        %1241 = vmatpush1.msra.mxu0 0.0
        %1242 = vmatprep.subr.mxu0 0.0
        %1243 = vmatpush1.msra.mxu0 0.0
        %1244 = vmatprep.subr.mxu0 0.0
        %1245 = vmatpush1.msra.mxu0 0.0
        %1246 = vmatprep.subr.mxu0 0.0
        %1247 = vmatpush1.msra.mxu0 0.0
        %1248 = vmatprep.subr.mxu0 0.0
        %1249 = vmatpush1.msra.mxu0 0.0
        %1250 = vmatprep.subr.mxu0 0.0
        %1251 = vmatpush1.msra.mxu0 0.0
        %1252 = vmatprep.subr.mxu0 0.0
        %1253 = vmatpush1.msra.mxu0 0.0
        %1254 = vmatprep.subr.mxu0 0.0
        %1255 = vmatpush1.msra.mxu0 0.0
        %1256 = vmatprep.subr.mxu0 0.0
        %1257 = vmatpush1.msra.mxu0 0.0
        %1258 = vmatprep.subr.mxu0 0.0
        %1259 = vmatpush1.msra.mxu0 0.0
        %1260 = vmatprep.subr.mxu0 0.0
        %1261 = vmatpush1.msra.mxu0 0.0
        %1262 = vmatprep.subr.mxu0 0.0
        %1263 = vmatpush1.msra.mxu0 0.0
        %1264 = vmatprep.subr.mxu0 0.0
        %1265 = vmatpush1.msra.mxu0 0.0
        %1266 = vmatprep.subr.mxu0 0.0
        %1267 = vmatpush1.msra.mxu0 0.0
        %1268 = vmatprep.subr.mxu0 0.0
        %1269 = vmatpush1.msra.mxu0 0.0
        %1270 = vmatprep.subr.mxu0 0.0
        %1271 = vmatpush1.msra.mxu0 0.0
        %1272 = vmatprep.subr.mxu0 0.0
        %1273 = vmatpush1.msra.mxu0 0.0
        %1274 = vmatprep.subr.mxu0 0.0
        %1275 = vmatpush1.msra.mxu0 0.0
        %1276 = vmatprep.subr.mxu0 0.0
        %1277 = vmatpush1.msra.mxu0 0.0
        %1278 = vmatprep.subr.mxu0 0.0
        %1279 = vmatpush1.msra.mxu0 0.0
        %1280 = vmatprep.mubr.f32.mxu0 0.0
        %1281 = vmatmul.mubr.f32.gmra.mrb[0].mxu0 %v1214
        %v1282 = vpop.f32.mrb[0].mxu0
        %v1283 = vadd.f32 0.0, %v1282
        %v1284 = vpop.f32.mrb[0].mxu0
        %1285 = vdwg.mxu0
        %1287 = vrot.lane.b32.xlu0 %v1283, 24
        %v1288 = vpop.permute.xlu0 %1287
        %vm1290 = vcmask 261312
        %1291 = vst.msk [vmem:[%s349] sm:$0xff] %vm1290, %v1288
        %s1292 = sand.u32 %s187, 1
        %s1293 = scalar_lea.sflag [#allocation5], %s1292
        %s1294 = sand.u32 %s187, 1
        %s1295 = smul.addr %s1294, 8
        %s1296 = scalar_lea.vmem [#allocation11], %s1295
        // Predicated region
        $region65: #{tpu_custom_call.1} parent=43 // pred_check
          %p1297 = pneg %p197
        $region66: #{tpu_custom_call.1} parent=43 // pred_check_branch
          %1299 = sbr.rel (%p1297) target = $region68
        $region67: #{tpu_custom_call.1} parent=43 // pred_region
          %s1301 = ssub.s32 128, 128
          %1302 = vsyncadd %s1293, %s1301
          %s1303 = sadd.s32 %s32, %s31
          %s1304 = smul.addr %s1303, 128
          %s1305 = scalar_lea.hbm %s6, %s1304
          %s1307 = sshll.u32 %s1296, 4
          %s1308 = int_to_ptr.vmem [resolvable:$true] %s1307
          %1310 = dma.vmem_to_hbm [thread:$0]  %s1308, 128, %s1305, %s1293
        $region68: #{tpu_custom_call.1} parent=43 // pred_fallthru
          _
      $region44: #{tpu_custom_call.1} parent=5 // pred_fallthru
        _
      %p1311 = scmp.le.s32.totalorder 2, %s22
      // Predicated region
      $region69: #{tpu_custom_call.1} parent=5 // pred_check
        %p1312 = pneg %p1311
      $region70: #{tpu_custom_call.1} parent=5 // pred_check_branch
        %1314 = sbr.rel (%p1312) target = $region72
      $region71: #{tpu_custom_call.1} parent=5 // pred_region
        %s1315 = ssub.s32 %s22, 2
        // Predicated region
        $region73: #{tpu_custom_call.1} parent=71 // pred_check
          %p1316 = pneg %p203
        $region74: #{tpu_custom_call.1} parent=71 // pred_check_branch
          %1318 = sbr.rel (%p1316) target = $region76
        $region75: #{tpu_custom_call.1} parent=71 // pred_region
          %s1319 = sand.u32 %s188, 1
          %s1320 = scalar_lea.sflag [#allocation5], %s1319
          %s1321 = sand.u32 %s188, 1
          %s1322 = smul.addr %s1321, 8
          %s1323 = scalar_lea.vmem [#allocation11], %s1322
          %1324 = dma.done %s1320, 128
        $region76: #{tpu_custom_call.1} parent=71 // pred_fallthru
          _
      $region72: #{tpu_custom_call.1} parent=5 // pred_fallthru
        _
    $region6: #{tpu_custom_call.1} parent=1 // loop_footer
      %s26 = sadd.s32 1, %s22
    $region7: #{tpu_custom_call.1} parent=1 // loop_footer_branch
      %21 = sbr.rel target = $region3
    $region8: #{tpu_custom_call.1} parent=1 // loop_exit
      _
    %1325 = vsyncpa [#allocation4], 1
    %s1326 = scalar_lea.sflag [#allocation4], 1
    %1327 = vsyncpa %s1326, 1
    %1328 = vsyncpa [#allocation7], 1
    %s1329 = scalar_lea.sflag [#allocation7], 1
    %1330 = vsyncpa %s1329, 1
    %1331 = vsyncpa [#allocation10], 1
    %1332 = vsyncpa [#allocation5], 1
    %s1333 = scalar_lea.sflag [#allocation5], 1
    %1334 = vsyncpa %s1333, 1

</llo_original>
